<compile_context>
chip_gen: v7x
topology: tpu7x:2x2x1
jax: 0.10.0
libtpu: 0.0.40
codegen_flags: <defaults>
</compile_context>

<pallas_src>
import functools

import jax
import jax.numpy as jnp
from jax.experimental import pallas as pl
from jax.experimental.pallas import tpu as pltpu


def _round_up(n, m):
    return (n + m - 1) // m * m


# --------------------------- fused LSTM + attention + FC kernel ---------------------------
def fused_kernel(x_ref, p_ref, o_ref, *, T, B, I, H, O, NH):
    """Fused forward pass.

    x_ref: (T*B, I)   time-major flattened input, row index = t*B + b
    p_ref: (R, 4H)    packed parameter slab (see pack_params for the row layout)
    o_ref: (B, O)     output
    """
    HD = H // NH

    # ---- static slices of the single packed parameter slab (one DMA total) ----
    row_whh = _round_up(I, 8)
    row_wqkv = row_whh + H
    row_wtail = row_wqkv + H
    row_bias = row_wtail + H

    wih = p_ref[0:I, :]                              # (I, 4H)
    whh = p_ref[row_whh:row_whh + H, :]              # (H, 4H)  - hoisted, loop invariant
    wqkv = p_ref[row_wqkv:row_wqkv + H, :]           # (H, 4H)  lanes 0:3H real (q pre-scaled)
    wtail = p_ref[row_wtail:row_wtail + H, :]        # (H, 4H)  lanes 0:O real (= Wo^T @ Wfc^T)
    b_lstm = p_ref[row_bias:row_bias + 1, :]         # (1, 4H)
    b_qkv = p_ref[row_bias + 1:row_bias + 2, :]      # (1, 4H)  lanes 0:3H real
    b_tail = p_ref[row_bias + 2:row_bias + 3, :]     # (1, 4H)  lanes 0:O real

    # ---------------- LSTM ----------------
    # Bulk input projection for all timesteps (off the serial chain).
    xg = jnp.dot(x_ref[...], wih, preferred_element_type=jnp.float32) + b_lstm  # (T*B, 4H)

    h = jnp.zeros((B, H), jnp.float32)
    c = jnp.zeros((B, H), jnp.float32)
    hs = []
    for t in range(T):                       # statically unrolled recurrence
        gates = xg[t * B:(t + 1) * B, :] + jnp.dot(
            h, whh, preferred_element_type=jnp.float32)          # (B, 4H)
        sig = jax.nn.sigmoid(gates)          # one full-width EUP pass
        th = jnp.tanh(gates)                 # one full-width EUP pass
        i_g = sig[:, 0:H]
        f_g = sig[:, H:2 * H]
        g_g = th[:, 2 * H:3 * H]
        o_g = sig[:, 3 * H:4 * H]
        c = f_g * c + i_g * g_g
        h = o_g * jnp.tanh(c)
        hs.append(h)
    hseq = jnp.concatenate(hs, axis=0)       # (T*B, H), row = t*B + b, never touches HBM

    # ---------------- fused QKV projection (single MXU pass) ----------------
    qkv = jnp.dot(hseq, wqkv, preferred_element_type=jnp.float32) + b_qkv   # (T*B, 4H)
    q_last = qkv[(T - 1) * B:T * B, 0:H]     # (B, H) — only the last query is ever used
    k = qkv[:, H:2 * H]                      # (T*B, H)
    v = qkv[:, 2 * H:3 * H]                  # (T*B, H)

    # one-hot head selectors built in-kernel (no extra DMAs, no int div/mod)
    row = jax.lax.broadcasted_iota(jnp.int32, (H, NH), 0)
    col = jax.lax.broadcasted_iota(jnp.int32, (H, NH), 1)
    hsel = ((row >= col * HD) & (row < (col + 1) * HD)).astype(jnp.float32)      # (H, NH)
    row_t = jax.lax.broadcasted_iota(jnp.int32, (NH, H), 0)
    col_t = jax.lax.broadcasted_iota(jnp.int32, (NH, H), 1)
    hsel_t = ((col_t >= row_t * HD) & (col_t < (row_t + 1) * HD)).astype(jnp.float32)  # (NH, H)

    # scores s[t*B+b, n] = sum_{h in head n} q_last[b, h] * k[t*B+b, h]   (scale folded in wq)
    q_rep = jnp.concatenate([q_last] * T, axis=0)                          # (T*B, H)
    s = jnp.dot(k * q_rep, hsel, preferred_element_type=jnp.float32)       # (T*B, NH)

    # softmax over time: per-(b, head) max / sum via static row-block accumulation
    m = s[0:B, :]
    for t in range(1, T):
        m = jnp.maximum(m, s[t * B:(t + 1) * B, :])                        # (B, NH)
    e = jnp.exp(s - jnp.concatenate([m] * T, axis=0))                      # (T*B, NH)
    denom = e[0:B, :]
    for t in range(1, T):
        denom = denom + e[t * B:(t + 1) * B, :]                            # (B, NH)

    # unnormalized context, single exact normalization at (B, H)
    e_full = jnp.dot(e, hsel_t, preferred_element_type=jnp.float32)        # (T*B, H)
    wv = e_full * v                                                        # (T*B, H)
    num = wv[0:B, :]
    for t in range(1, T):
        num = num + wv[t * B:(t + 1) * B, :]                               # (B, H)
    ctx = num / jnp.dot(denom, hsel_t, preferred_element_type=jnp.float32)  # (B, H)

    # folded out_proj + fc tail (exact algebraic fold done in pack_params)
    out = jnp.dot(ctx, wtail, preferred_element_type=jnp.float32) + b_tail  # (B, 4H)
    o_ref[...] = out[:, 0:O]


# ------------------------------------ param packing ------------------------------------
def init_params(key, input_size, hidden_size, output_size):
    H = hidden_size
    ks = jax.random.split(key, 10)
    bound = 1.0 / jnp.sqrt(jnp.float32(H))

    def u(k, shape, b):
        return jax.random.uniform(k, shape, jnp.float32, -b, b)

    return dict(
        w_ih=u(ks[0], (4 * H, input_size), bound),
        w_hh=u(ks[1], (4 * H, H), bound),
        b_ih=u(ks[2], (4 * H,), bound),
        b_hh=u(ks[3], (4 * H,), bound),
        in_proj_w=u(ks[4], (3 * H, H), jnp.sqrt(3.0 / H)),   # xavier-uniform-like
        in_proj_b=jnp.zeros((3 * H,), jnp.float32),
        out_proj_w=u(ks[5], (H, H), bound),
        out_proj_b=jnp.zeros((H,), jnp.float32),
        fc_w=u(ks[6], (output_size, H), bound),
        fc_b=u(ks[7], (output_size,), bound),
    )


def pack_params(params, num_heads=2):
    """One-time packing of every weight/bias into a single lane-dense (R, 4H) slab."""
    H = params['w_hh'].shape[1]
    I = params['w_ih'].shape[1]
    O = params['fc_w'].shape[0]
    hd = H // num_heads
    G = 4 * H
    assert 3 * H <= G and O <= G

    wih_t = params['w_ih'].T                                   # (I, 4H)
    whh_t = params['w_hh'].T                                   # (H, 4H)
    b_lstm = params['b_ih'] + params['b_hh']                   # (4H,)

    Wi, bi = params['in_proj_w'], params['in_proj_b']
    scale = 1.0 / jnp.sqrt(jnp.float32(hd))
    wqkv = jnp.concatenate(
        [Wi[0:H].T * scale, Wi[H:2 * H].T, Wi[2 * H:3 * H].T], axis=1)      # (H, 3H)
    b_qkv = jnp.concatenate([bi[0:H] * scale, bi[H:2 * H], bi[2 * H:3 * H]])  # (3H,)

    # fold out_proj into fc:  (ctx @ Wo^T + bo) @ Wfc^T + bfc = ctx @ W_tail + b_tail
    wfc_t = params['fc_w'].T                                   # (H, O)
    w_tail = params['out_proj_w'].T @ wfc_t                    # (H, O)
    b_tail = params['out_proj_b'] @ wfc_t + params['fc_b']     # (O,)

    row_whh = _round_up(I, 8)
    row_wqkv = row_whh + H
    row_wtail = row_wqkv + H
    row_bias = row_wtail + H
    n_rows = _round_up(row_bias + 3, 8)

    slab = jnp.zeros((n_rows, G), jnp.float32)
    slab = slab.at[0:I, :].set(wih_t)
    slab = slab.at[row_whh:row_whh + H, :].set(whh_t)
    slab = slab.at[row_wqkv:row_wqkv + H, 0:3 * H].set(wqkv)
    slab = slab.at[row_wtail:row_wtail + H, 0:O].set(w_tail)
    slab = slab.at[row_bias, :].set(b_lstm)
    slab = slab.at[row_bias + 1, 0:3 * H].set(b_qkv)
    slab = slab.at[row_bias + 2, 0:O].set(b_tail)
    return slab


# ------------------------------------ forward wrapper ------------------------------------
@functools.partial(jax.jit, static_argnames=("num_heads", "output_size"))
def lstm_attention_forward(x, slab, *, num_heads=2, output_size=4):
    B, T, I = x.shape
    H = slab.shape[1] // 4

    # time-major flatten: row index = t*B + b (folds into the single jitted dispatch)
    x_flat = jnp.transpose(x, (1, 0, 2)).reshape(T * B, I)

    kernel = functools.partial(fused_kernel, T=T, B=B, I=I, H=H,
                               O=output_size, NH=num_heads)
    vmem = pl.BlockSpec(memory_space=pltpu.MemorySpace.VMEM)
    # NOTE: single ungridded call -> one TensorCore; at B=2 that is all we need.  For
    # larger batches, add a grid over B with dimension_semantics=("parallel",).
    return pl.pallas_call(
        kernel,
        out_shape=jax.ShapeDtypeStruct((B, output_size), jnp.float32),
        in_specs=[vmem, vmem],
        out_specs=vmem,
    )(x_flat, slab)


# ------------------------------------ reference ------------------------------------
def reference_forward(x, params, num_heads=2):
    B, T, I = x.shape
    H = params['w_hh'].shape[1]
    h = jnp.zeros((B, H), jnp.float32)
    c = jnp.zeros((B, H), jnp.float32)
    b = params['b_ih'] + params['b_hh']
    outs = []
    for t in range(T):
        gates = x[:, t, :] @ params['w_ih'].T + h @ params['w_hh'].T + b
        i_g = jax.nn.sigmoid(gates[:, :H])
        f_g = jax.nn.sigmoid(gates[:, H:2 * H])
        g_g = jnp.tanh(gates[:, 2 * H:3 * H])
        o_g = jax.nn.sigmoid(gates[:, 3 * H:])
        c = f_g * c + i_g * g_g
        h = o_g * jnp.tanh(c)
        outs.append(h)
    seq = jnp.stack(outs, axis=1)                           # (B, T, H)
    Wi, bi = params['in_proj_w'], params['in_proj_b']
    q = seq @ Wi[:H].T + bi[:H]
    k = seq @ Wi[H:2 * H].T + bi[H:2 * H]
    v = seq @ Wi[2 * H:].T + bi[2 * H:]
    hd = H // num_heads
    ctxs = []
    for n in range(num_heads):
        lo, hi = n * hd, (n + 1) * hd
        s = jnp.einsum('bqd,bkd->bqk', q[..., lo:hi], k[..., lo:hi]) / jnp.sqrt(
            jnp.float32(hd))
        p = jax.nn.softmax(s, axis=-1)
        ctxs.append(jnp.einsum('bqk,bkd->bqd', p, v[..., lo:hi]))
    ctx = jnp.concatenate(ctxs, axis=-1)
    attn = ctx @ params['out_proj_w'].T + params['out_proj_b']
    return attn[:, -1, :] @ params['fc_w'].T + params['fc_b']


if __name__ == "__main__":
    # shapes implied by the forward: batch=2, seq=8, input_size=4,
    # hidden_size=32 (2 heads -> head_dim=16), output_size=4
    B, T, I, H, O, NH = 2, 8, 4, 32, 4, 2

    key = jax.random.PRNGKey(0)
    k_x, k_p = jax.random.split(key)
    x = jax.random.normal(k_x, (B, T, I), jnp.float32)
    params = init_params(k_p, I, H, O)

    slab = pack_params(params, num_heads=NH)          # one-time packing (2 DMAs per call)
    out = lstm_attention_forward(x, slab, num_heads=NH, output_size=O)
    out = jax.block_until_ready(out)

    ref = reference_forward(x, params, num_heads=NH)
    assert out.shape == (B, O)
    assert jnp.allclose(out, ref, rtol=2e-3, atol=2e-3), "mismatch vs JAX reference"

    print("KERNEL_OK")
</pallas_src>

<mosaic_0001>
module attributes {stable_mosaic.version = 11 : i64} {
  func.func @fused_kernel(%arg0: memref<16x4xf32, #tpu.memory_space<vmem>>, %arg1: memref<112x128xf32, #tpu.memory_space<vmem>>, %arg2: memref<2x4xf32, #tpu.memory_space<vmem>>) attributes {dimension_semantics = [], scalar_prefetch = 0 : i64, scratch_operands = 0 : i64, tpu.core_type = #tpu.core_type<tc>} {
    %c0 = arith.constant 0 : index
    %c0_0 = arith.constant 0 : index
    %0 = vector.load %arg1[%c0, %c0_0] : memref<112x128xf32, #tpu.memory_space<vmem>>, vector<4x128xf32>
    %c8 = arith.constant 8 : index
    %c0_1 = arith.constant 0 : index
    %1 = vector.load %arg1[%c8, %c0_1] : memref<112x128xf32, #tpu.memory_space<vmem>>, vector<32x128xf32>
    %c40 = arith.constant 40 : index
    %c0_2 = arith.constant 0 : index
    %2 = vector.load %arg1[%c40, %c0_2] : memref<112x128xf32, #tpu.memory_space<vmem>>, vector<32x128xf32>
    %c72 = arith.constant 72 : index
    %c0_3 = arith.constant 0 : index
    %3 = vector.load %arg1[%c72, %c0_3] : memref<112x128xf32, #tpu.memory_space<vmem>>, vector<32x128xf32>
    %c104 = arith.constant 104 : index
    %c0_4 = arith.constant 0 : index
    %4 = vector.load %arg1[%c104, %c0_4] : memref<112x128xf32, #tpu.memory_space<vmem>>, vector<1x128xf32>
    %c105 = arith.constant 105 : index
    %c0_5 = arith.constant 0 : index
    %5 = vector.load %arg1[%c105, %c0_5] : memref<112x128xf32, #tpu.memory_space<vmem>>, vector<1x128xf32>
    %c106 = arith.constant 106 : index
    %c0_6 = arith.constant 0 : index
    %6 = vector.load %arg1[%c106, %c0_6] : memref<112x128xf32, #tpu.memory_space<vmem>>, vector<1x128xf32>
    %c0_7 = arith.constant 0 : index
    %c0_8 = arith.constant 0 : index
    %7 = vector.load %arg0[%c0_7, %c0_8] : memref<16x4xf32, #tpu.memory_space<vmem>>, vector<16x4xf32>
    %cst = arith.constant dense<0.000000e+00> : vector<16x128xf32>
    %8 = tpu.matmul %7, %0, %cst {dimension_numbers = #tpu.dot_dimension_numbers<[1], [0], [0], [1], [0, 0, 1, 1], [], []>} : vector<16x4xf32>, vector<4x128xf32>, vector<16x128xf32> -> vector<16x128xf32>
    %9 = vector.broadcast %4 : vector<1x128xf32> to vector<16x128xf32>
    %10 = arith.addf %8, %9 : vector<16x128xf32>
    %cst_9 = arith.constant 0.000000e+00 : f32
    %11 = vector.broadcast %cst_9 : f32 to vector<2x32xf32>
    %cst_10 = arith.constant 0.000000e+00 : f32
    %12 = vector.broadcast %cst_10 : f32 to vector<2x32xf32>
    %13 = vector.extract_strided_slice %10 {offsets = [0, 0], sizes = [2, 128], strides = [1, 1]} : vector<16x128xf32> to vector<2x128xf32>
    %cst_11 = arith.constant dense<0.000000e+00> : vector<2x128xf32>
    %14 = tpu.matmul %11, %1, %cst_11 {dimension_numbers = #tpu.dot_dimension_numbers<[1], [0], [0], [1], [0, 0, 1, 1], [], []>} : vector<2x32xf32>, vector<32x128xf32>, vector<2x128xf32> -> vector<2x128xf32>
    %15 = arith.addf %13, %14 : vector<2x128xf32>
    %16 = arith.negf %15 : vector<2x128xf32>
    %17 = math.exp %16 : vector<2x128xf32>
    %cst_12 = arith.constant 1.000000e+00 : f32
    %18 = vector.broadcast %cst_12 : f32 to vector<2x128xf32>
    %19 = arith.addf %18, %17 : vector<2x128xf32>
    %20 = arith.divf %18, %19 : vector<2x128xf32>
    %21 = math.tanh %15 : vector<2x128xf32>
    %22 = vector.extract_strided_slice %20 {offsets = [0, 0], sizes = [2, 32], strides = [1, 1]} : vector<2x128xf32> to vector<2x32xf32>
    %23 = vector.extract_strided_slice %20 {offsets = [0, 32], sizes = [2, 32], strides = [1, 1]} : vector<2x128xf32> to vector<2x32xf32>
    %24 = vector.extract_strided_slice %21 {offsets = [0, 64], sizes = [2, 32], strides = [1, 1]} : vector<2x128xf32> to vector<2x32xf32>
    %25 = vector.extract_strided_slice %20 {offsets = [0, 96], sizes = [2, 32], strides = [1, 1]} : vector<2x128xf32> to vector<2x32xf32>
    %26 = arith.mulf %23, %12 : vector<2x32xf32>
    %27 = arith.mulf %22, %24 : vector<2x32xf32>
    %28 = arith.addf %26, %27 : vector<2x32xf32>
    %29 = math.tanh %28 : vector<2x32xf32>
    %30 = arith.mulf %25, %29 : vector<2x32xf32>
    %31 = vector.extract_strided_slice %10 {offsets = [2, 0], sizes = [2, 128], strides = [1, 1]} : vector<16x128xf32> to vector<2x128xf32>
    %cst_13 = arith.constant dense<0.000000e+00> : vector<2x128xf32>
    %32 = tpu.matmul %30, %1, %cst_13 {dimension_numbers = #tpu.dot_dimension_numbers<[1], [0], [0], [1], [0, 0, 1, 1], [], []>} : vector<2x32xf32>, vector<32x128xf32>, vector<2x128xf32> -> vector<2x128xf32>
    %33 = arith.addf %31, %32 : vector<2x128xf32>
    %34 = arith.negf %33 : vector<2x128xf32>
    %35 = math.exp %34 : vector<2x128xf32>
    %cst_14 = arith.constant 1.000000e+00 : f32
    %36 = vector.broadcast %cst_14 : f32 to vector<2x128xf32>
    %37 = arith.addf %36, %35 : vector<2x128xf32>
    %38 = arith.divf %36, %37 : vector<2x128xf32>
    %39 = math.tanh %33 : vector<2x128xf32>
    %40 = vector.extract_strided_slice %38 {offsets = [0, 0], sizes = [2, 32], strides = [1, 1]} : vector<2x128xf32> to vector<2x32xf32>
    %41 = vector.extract_strided_slice %38 {offsets = [0, 32], sizes = [2, 32], strides = [1, 1]} : vector<2x128xf32> to vector<2x32xf32>
    %42 = vector.extract_strided_slice %39 {offsets = [0, 64], sizes = [2, 32], strides = [1, 1]} : vector<2x128xf32> to vector<2x32xf32>
    %43 = vector.extract_strided_slice %38 {offsets = [0, 96], sizes = [2, 32], strides = [1, 1]} : vector<2x128xf32> to vector<2x32xf32>
    %44 = arith.mulf %41, %28 : vector<2x32xf32>
    %45 = arith.mulf %40, %42 : vector<2x32xf32>
    %46 = arith.addf %44, %45 : vector<2x32xf32>
    %47 = math.tanh %46 : vector<2x32xf32>
    %48 = arith.mulf %43, %47 : vector<2x32xf32>
    %49 = vector.extract_strided_slice %10 {offsets = [4, 0], sizes = [2, 128], strides = [1, 1]} : vector<16x128xf32> to vector<2x128xf32>
    %cst_15 = arith.constant dense<0.000000e+00> : vector<2x128xf32>
    %50 = tpu.matmul %48, %1, %cst_15 {dimension_numbers = #tpu.dot_dimension_numbers<[1], [0], [0], [1], [0, 0, 1, 1], [], []>} : vector<2x32xf32>, vector<32x128xf32>, vector<2x128xf32> -> vector<2x128xf32>
    %51 = arith.addf %49, %50 : vector<2x128xf32>
    %52 = arith.negf %51 : vector<2x128xf32>
    %53 = math.exp %52 : vector<2x128xf32>
    %cst_16 = arith.constant 1.000000e+00 : f32
    %54 = vector.broadcast %cst_16 : f32 to vector<2x128xf32>
    %55 = arith.addf %54, %53 : vector<2x128xf32>
    %56 = arith.divf %54, %55 : vector<2x128xf32>
    %57 = math.tanh %51 : vector<2x128xf32>
    %58 = vector.extract_strided_slice %56 {offsets = [0, 0], sizes = [2, 32], strides = [1, 1]} : vector<2x128xf32> to vector<2x32xf32>
    %59 = vector.extract_strided_slice %56 {offsets = [0, 32], sizes = [2, 32], strides = [1, 1]} : vector<2x128xf32> to vector<2x32xf32>
    %60 = vector.extract_strided_slice %57 {offsets = [0, 64], sizes = [2, 32], strides = [1, 1]} : vector<2x128xf32> to vector<2x32xf32>
    %61 = vector.extract_strided_slice %56 {offsets = [0, 96], sizes = [2, 32], strides = [1, 1]} : vector<2x128xf32> to vector<2x32xf32>
    %62 = arith.mulf %59, %46 : vector<2x32xf32>
    %63 = arith.mulf %58, %60 : vector<2x32xf32>
    %64 = arith.addf %62, %63 : vector<2x32xf32>
    %65 = math.tanh %64 : vector<2x32xf32>
    %66 = arith.mulf %61, %65 : vector<2x32xf32>
    %67 = vector.extract_strided_slice %10 {offsets = [6, 0], sizes = [2, 128], strides = [1, 1]} : vector<16x128xf32> to vector<2x128xf32>
    %cst_17 = arith.constant dense<0.000000e+00> : vector<2x128xf32>
    %68 = tpu.matmul %66, %1, %cst_17 {dimension_numbers = #tpu.dot_dimension_numbers<[1], [0], [0], [1], [0, 0, 1, 1], [], []>} : vector<2x32xf32>, vector<32x128xf32>, vector<2x128xf32> -> vector<2x128xf32>
    %69 = arith.addf %67, %68 : vector<2x128xf32>
    %70 = arith.negf %69 : vector<2x128xf32>
    %71 = math.exp %70 : vector<2x128xf32>
    %cst_18 = arith.constant 1.000000e+00 : f32
    %72 = vector.broadcast %cst_18 : f32 to vector<2x128xf32>
    %73 = arith.addf %72, %71 : vector<2x128xf32>
    %74 = arith.divf %72, %73 : vector<2x128xf32>
    %75 = math.tanh %69 : vector<2x128xf32>
    %76 = vector.extract_strided_slice %74 {offsets = [0, 0], sizes = [2, 32], strides = [1, 1]} : vector<2x128xf32> to vector<2x32xf32>
    %77 = vector.extract_strided_slice %74 {offsets = [0, 32], sizes = [2, 32], strides = [1, 1]} : vector<2x128xf32> to vector<2x32xf32>
    %78 = vector.extract_strided_slice %75 {offsets = [0, 64], sizes = [2, 32], strides = [1, 1]} : vector<2x128xf32> to vector<2x32xf32>
    %79 = vector.extract_strided_slice %74 {offsets = [0, 96], sizes = [2, 32], strides = [1, 1]} : vector<2x128xf32> to vector<2x32xf32>
    %80 = arith.mulf %77, %64 : vector<2x32xf32>
    %81 = arith.mulf %76, %78 : vector<2x32xf32>
    %82 = arith.addf %80, %81 : vector<2x32xf32>
    %83 = math.tanh %82 : vector<2x32xf32>
    %84 = arith.mulf %79, %83 : vector<2x32xf32>
    %85 = vector.extract_strided_slice %10 {offsets = [8, 0], sizes = [2, 128], strides = [1, 1]} : vector<16x128xf32> to vector<2x128xf32>
    %cst_19 = arith.constant dense<0.000000e+00> : vector<2x128xf32>
    %86 = tpu.matmul %84, %1, %cst_19 {dimension_numbers = #tpu.dot_dimension_numbers<[1], [0], [0], [1], [0, 0, 1, 1], [], []>} : vector<2x32xf32>, vector<32x128xf32>, vector<2x128xf32> -> vector<2x128xf32>
    %87 = arith.addf %85, %86 : vector<2x128xf32>
    %88 = arith.negf %87 : vector<2x128xf32>
    %89 = math.exp %88 : vector<2x128xf32>
    %cst_20 = arith.constant 1.000000e+00 : f32
    %90 = vector.broadcast %cst_20 : f32 to vector<2x128xf32>
    %91 = arith.addf %90, %89 : vector<2x128xf32>
    %92 = arith.divf %90, %91 : vector<2x128xf32>
    %93 = math.tanh %87 : vector<2x128xf32>
    %94 = vector.extract_strided_slice %92 {offsets = [0, 0], sizes = [2, 32], strides = [1, 1]} : vector<2x128xf32> to vector<2x32xf32>
    %95 = vector.extract_strided_slice %92 {offsets = [0, 32], sizes = [2, 32], strides = [1, 1]} : vector<2x128xf32> to vector<2x32xf32>
    %96 = vector.extract_strided_slice %93 {offsets = [0, 64], sizes = [2, 32], strides = [1, 1]} : vector<2x128xf32> to vector<2x32xf32>
    %97 = vector.extract_strided_slice %92 {offsets = [0, 96], sizes = [2, 32], strides = [1, 1]} : vector<2x128xf32> to vector<2x32xf32>
    %98 = arith.mulf %95, %82 : vector<2x32xf32>
    %99 = arith.mulf %94, %96 : vector<2x32xf32>
    %100 = arith.addf %98, %99 : vector<2x32xf32>
    %101 = math.tanh %100 : vector<2x32xf32>
    %102 = arith.mulf %97, %101 : vector<2x32xf32>
    %103 = vector.extract_strided_slice %10 {offsets = [10, 0], sizes = [2, 128], strides = [1, 1]} : vector<16x128xf32> to vector<2x128xf32>
    %cst_21 = arith.constant dense<0.000000e+00> : vector<2x128xf32>
    %104 = tpu.matmul %102, %1, %cst_21 {dimension_numbers = #tpu.dot_dimension_numbers<[1], [0], [0], [1], [0, 0, 1, 1], [], []>} : vector<2x32xf32>, vector<32x128xf32>, vector<2x128xf32> -> vector<2x128xf32>
    %105 = arith.addf %103, %104 : vector<2x128xf32>
    %106 = arith.negf %105 : vector<2x128xf32>
    %107 = math.exp %106 : vector<2x128xf32>
    %cst_22 = arith.constant 1.000000e+00 : f32
    %108 = vector.broadcast %cst_22 : f32 to vector<2x128xf32>
    %109 = arith.addf %108, %107 : vector<2x128xf32>
    %110 = arith.divf %108, %109 : vector<2x128xf32>
    %111 = math.tanh %105 : vector<2x128xf32>
    %112 = vector.extract_strided_slice %110 {offsets = [0, 0], sizes = [2, 32], strides = [1, 1]} : vector<2x128xf32> to vector<2x32xf32>
    %113 = vector.extract_strided_slice %110 {offsets = [0, 32], sizes = [2, 32], strides = [1, 1]} : vector<2x128xf32> to vector<2x32xf32>
    %114 = vector.extract_strided_slice %111 {offsets = [0, 64], sizes = [2, 32], strides = [1, 1]} : vector<2x128xf32> to vector<2x32xf32>
    %115 = vector.extract_strided_slice %110 {offsets = [0, 96], sizes = [2, 32], strides = [1, 1]} : vector<2x128xf32> to vector<2x32xf32>
    %116 = arith.mulf %113, %100 : vector<2x32xf32>
    %117 = arith.mulf %112, %114 : vector<2x32xf32>
    %118 = arith.addf %116, %117 : vector<2x32xf32>
    %119 = math.tanh %118 : vector<2x32xf32>
    %120 = arith.mulf %115, %119 : vector<2x32xf32>
    %121 = vector.extract_strided_slice %10 {offsets = [12, 0], sizes = [2, 128], strides = [1, 1]} : vector<16x128xf32> to vector<2x128xf32>
    %cst_23 = arith.constant dense<0.000000e+00> : vector<2x128xf32>
    %122 = tpu.matmul %120, %1, %cst_23 {dimension_numbers = #tpu.dot_dimension_numbers<[1], [0], [0], [1], [0, 0, 1, 1], [], []>} : vector<2x32xf32>, vector<32x128xf32>, vector<2x128xf32> -> vector<2x128xf32>
    %123 = arith.addf %121, %122 : vector<2x128xf32>
    %124 = arith.negf %123 : vector<2x128xf32>
    %125 = math.exp %124 : vector<2x128xf32>
    %cst_24 = arith.constant 1.000000e+00 : f32
    %126 = vector.broadcast %cst_24 : f32 to vector<2x128xf32>
    %127 = arith.addf %126, %125 : vector<2x128xf32>
    %128 = arith.divf %126, %127 : vector<2x128xf32>
    %129 = math.tanh %123 : vector<2x128xf32>
    %130 = vector.extract_strided_slice %128 {offsets = [0, 0], sizes = [2, 32], strides = [1, 1]} : vector<2x128xf32> to vector<2x32xf32>
    %131 = vector.extract_strided_slice %128 {offsets = [0, 32], sizes = [2, 32], strides = [1, 1]} : vector<2x128xf32> to vector<2x32xf32>
    %132 = vector.extract_strided_slice %129 {offsets = [0, 64], sizes = [2, 32], strides = [1, 1]} : vector<2x128xf32> to vector<2x32xf32>
    %133 = vector.extract_strided_slice %128 {offsets = [0, 96], sizes = [2, 32], strides = [1, 1]} : vector<2x128xf32> to vector<2x32xf32>
    %134 = arith.mulf %131, %118 : vector<2x32xf32>
    %135 = arith.mulf %130, %132 : vector<2x32xf32>
    %136 = arith.addf %134, %135 : vector<2x32xf32>
    %137 = math.tanh %136 : vector<2x32xf32>
    %138 = arith.mulf %133, %137 : vector<2x32xf32>
    %139 = vector.extract_strided_slice %10 {offsets = [14, 0], sizes = [2, 128], strides = [1, 1]} : vector<16x128xf32> to vector<2x128xf32>
    %cst_25 = arith.constant dense<0.000000e+00> : vector<2x128xf32>
    %140 = tpu.matmul %138, %1, %cst_25 {dimension_numbers = #tpu.dot_dimension_numbers<[1], [0], [0], [1], [0, 0, 1, 1], [], []>} : vector<2x32xf32>, vector<32x128xf32>, vector<2x128xf32> -> vector<2x128xf32>
    %141 = arith.addf %139, %140 : vector<2x128xf32>
    %142 = arith.negf %141 : vector<2x128xf32>
    %143 = math.exp %142 : vector<2x128xf32>
    %cst_26 = arith.constant 1.000000e+00 : f32
    %144 = vector.broadcast %cst_26 : f32 to vector<2x128xf32>
    %145 = arith.addf %144, %143 : vector<2x128xf32>
    %146 = arith.divf %144, %145 : vector<2x128xf32>
    %147 = math.tanh %141 : vector<2x128xf32>
    %148 = vector.extract_strided_slice %146 {offsets = [0, 0], sizes = [2, 32], strides = [1, 1]} : vector<2x128xf32> to vector<2x32xf32>
    %149 = vector.extract_strided_slice %146 {offsets = [0, 32], sizes = [2, 32], strides = [1, 1]} : vector<2x128xf32> to vector<2x32xf32>
    %150 = vector.extract_strided_slice %147 {offsets = [0, 64], sizes = [2, 32], strides = [1, 1]} : vector<2x128xf32> to vector<2x32xf32>
    %151 = vector.extract_strided_slice %146 {offsets = [0, 96], sizes = [2, 32], strides = [1, 1]} : vector<2x128xf32> to vector<2x32xf32>
    %152 = arith.mulf %149, %136 : vector<2x32xf32>
    %153 = arith.mulf %148, %150 : vector<2x32xf32>
    %154 = arith.addf %152, %153 : vector<2x32xf32>
    %155 = math.tanh %154 : vector<2x32xf32>
    %156 = arith.mulf %151, %155 : vector<2x32xf32>
    %157 = tpu.concatenate %30, %48, %66, %84, %102, %120, %138, %156 in 0 : vector<2x32xf32>, vector<2x32xf32>, vector<2x32xf32>, vector<2x32xf32>, vector<2x32xf32>, vector<2x32xf32>, vector<2x32xf32>, vector<2x32xf32> -> vector<16x32xf32>
    %cst_27 = arith.constant dense<0.000000e+00> : vector<16x128xf32>
    %158 = tpu.matmul %157, %2, %cst_27 {dimension_numbers = #tpu.dot_dimension_numbers<[1], [0], [0], [1], [0, 0, 1, 1], [], []>} : vector<16x32xf32>, vector<32x128xf32>, vector<16x128xf32> -> vector<16x128xf32>
    %159 = vector.broadcast %5 : vector<1x128xf32> to vector<16x128xf32>
    %160 = arith.addf %158, %159 : vector<16x128xf32>
    %161 = vector.extract_strided_slice %160 {offsets = [14, 0], sizes = [2, 32], strides = [1, 1]} : vector<16x128xf32> to vector<2x32xf32>
    %162 = vector.extract_strided_slice %160 {offsets = [0, 32], sizes = [16, 32], strides = [1, 1]} : vector<16x128xf32> to vector<16x32xf32>
    %163 = vector.extract_strided_slice %160 {offsets = [0, 64], sizes = [16, 32], strides = [1, 1]} : vector<16x128xf32> to vector<16x32xf32>
    %164 = tpu.iota {dimensions = array<i32: 0>} : vector<32x2xi32>
    %165 = tpu.iota {dimensions = array<i32: 1>} : vector<32x2xi32>
    %c16_i32 = arith.constant 16 : i32
    %166 = vector.broadcast %c16_i32 : i32 to vector<32x2xi32>
    %167 = arith.muli %165, %166 : vector<32x2xi32>
    %168 = arith.cmpi sge, %164, %167 : vector<32x2xi32>
    %c1_i32 = arith.constant 1 : i32
    %169 = vector.broadcast %c1_i32 : i32 to vector<32x2xi32>
    %170 = arith.addi %165, %169 : vector<32x2xi32>
    %c16_i32_28 = arith.constant 16 : i32
    %171 = vector.broadcast %c16_i32_28 : i32 to vector<32x2xi32>
    %172 = arith.muli %170, %171 : vector<32x2xi32>
    %173 = arith.cmpi slt, %164, %172 : vector<32x2xi32>
    %174 = arith.andi %168, %173 : vector<32x2xi1>
    %175 = arith.extui %174 : vector<32x2xi1> to vector<32x2xi32>
    %176 = arith.sitofp %175 : vector<32x2xi32> to vector<32x2xf32>
    %177 = tpu.iota {dimensions = array<i32: 0>} : vector<2x32xi32>
    %178 = tpu.iota {dimensions = array<i32: 1>} : vector<2x32xi32>
    %c16_i32_29 = arith.constant 16 : i32
    %179 = vector.broadcast %c16_i32_29 : i32 to vector<2x32xi32>
    %180 = arith.muli %177, %179 : vector<2x32xi32>
    %181 = arith.cmpi sge, %178, %180 : vector<2x32xi32>
    %c1_i32_30 = arith.constant 1 : i32
    %182 = vector.broadcast %c1_i32_30 : i32 to vector<2x32xi32>
    %183 = arith.addi %177, %182 : vector<2x32xi32>
    %c16_i32_31 = arith.constant 16 : i32
    %184 = vector.broadcast %c16_i32_31 : i32 to vector<2x32xi32>
    %185 = arith.muli %183, %184 : vector<2x32xi32>
    %186 = arith.cmpi slt, %178, %185 : vector<2x32xi32>
    %187 = arith.andi %181, %186 : vector<2x32xi1>
    %188 = arith.extui %187 : vector<2x32xi1> to vector<2x32xi32>
    %189 = arith.sitofp %188 : vector<2x32xi32> to vector<2x32xf32>
    %190 = tpu.concatenate %161, %161, %161, %161, %161, %161, %161, %161 in 0 : vector<2x32xf32>, vector<2x32xf32>, vector<2x32xf32>, vector<2x32xf32>, vector<2x32xf32>, vector<2x32xf32>, vector<2x32xf32>, vector<2x32xf32> -> vector<16x32xf32>
    %191 = arith.mulf %162, %190 : vector<16x32xf32>
    %cst_32 = arith.constant dense<0.000000e+00> : vector<16x2xf32>
    %192 = tpu.matmul %191, %176, %cst_32 {dimension_numbers = #tpu.dot_dimension_numbers<[1], [0], [0], [1], [0, 0, 1, 1], [], []>} : vector<16x32xf32>, vector<32x2xf32>, vector<16x2xf32> -> vector<16x2xf32>
    %193 = vector.extract_strided_slice %192 {offsets = [0, 0], sizes = [2, 2], strides = [1, 1]} : vector<16x2xf32> to vector<2x2xf32>
    %194 = vector.extract_strided_slice %192 {offsets = [2, 0], sizes = [2, 2], strides = [1, 1]} : vector<16x2xf32> to vector<2x2xf32>
    %195 = arith.maximumf %193, %194 : vector<2x2xf32>
    %196 = vector.extract_strided_slice %192 {offsets = [4, 0], sizes = [2, 2], strides = [1, 1]} : vector<16x2xf32> to vector<2x2xf32>
    %197 = arith.maximumf %195, %196 : vector<2x2xf32>
    %198 = vector.extract_strided_slice %192 {offsets = [6, 0], sizes = [2, 2], strides = [1, 1]} : vector<16x2xf32> to vector<2x2xf32>
    %199 = arith.maximumf %197, %198 : vector<2x2xf32>
    %200 = vector.extract_strided_slice %192 {offsets = [8, 0], sizes = [2, 2], strides = [1, 1]} : vector<16x2xf32> to vector<2x2xf32>
    %201 = arith.maximumf %199, %200 : vector<2x2xf32>
    %202 = vector.extract_strided_slice %192 {offsets = [10, 0], sizes = [2, 2], strides = [1, 1]} : vector<16x2xf32> to vector<2x2xf32>
    %203 = arith.maximumf %201, %202 : vector<2x2xf32>
    %204 = vector.extract_strided_slice %192 {offsets = [12, 0], sizes = [2, 2], strides = [1, 1]} : vector<16x2xf32> to vector<2x2xf32>
    %205 = arith.maximumf %203, %204 : vector<2x2xf32>
    %206 = vector.extract_strided_slice %192 {offsets = [14, 0], sizes = [2, 2], strides = [1, 1]} : vector<16x2xf32> to vector<2x2xf32>
    %207 = arith.maximumf %205, %206 : vector<2x2xf32>
    %208 = tpu.concatenate %207, %207, %207, %207, %207, %207, %207, %207 in 0 : vector<2x2xf32>, vector<2x2xf32>, vector<2x2xf32>, vector<2x2xf32>, vector<2x2xf32>, vector<2x2xf32>, vector<2x2xf32>, vector<2x2xf32> -> vector<16x2xf32>
    %209 = arith.subf %192, %208 : vector<16x2xf32>
    %210 = math.exp %209 : vector<16x2xf32>
    %211 = vector.extract_strided_slice %210 {offsets = [0, 0], sizes = [2, 2], strides = [1, 1]} : vector<16x2xf32> to vector<2x2xf32>
    %212 = vector.extract_strided_slice %210 {offsets = [2, 0], sizes = [2, 2], strides = [1, 1]} : vector<16x2xf32> to vector<2x2xf32>
    %213 = arith.addf %211, %212 : vector<2x2xf32>
    %214 = vector.extract_strided_slice %210 {offsets = [4, 0], sizes = [2, 2], strides = [1, 1]} : vector<16x2xf32> to vector<2x2xf32>
    %215 = arith.addf %213, %214 : vector<2x2xf32>
    %216 = vector.extract_strided_slice %210 {offsets = [6, 0], sizes = [2, 2], strides = [1, 1]} : vector<16x2xf32> to vector<2x2xf32>
    %217 = arith.addf %215, %216 : vector<2x2xf32>
    %218 = vector.extract_strided_slice %210 {offsets = [8, 0], sizes = [2, 2], strides = [1, 1]} : vector<16x2xf32> to vector<2x2xf32>
    %219 = arith.addf %217, %218 : vector<2x2xf32>
    %220 = vector.extract_strided_slice %210 {offsets = [10, 0], sizes = [2, 2], strides = [1, 1]} : vector<16x2xf32> to vector<2x2xf32>
    %221 = arith.addf %219, %220 : vector<2x2xf32>
    %222 = vector.extract_strided_slice %210 {offsets = [12, 0], sizes = [2, 2], strides = [1, 1]} : vector<16x2xf32> to vector<2x2xf32>
    %223 = arith.addf %221, %222 : vector<2x2xf32>
    %224 = vector.extract_strided_slice %210 {offsets = [14, 0], sizes = [2, 2], strides = [1, 1]} : vector<16x2xf32> to vector<2x2xf32>
    %225 = arith.addf %223, %224 : vector<2x2xf32>
    %cst_33 = arith.constant dense<0.000000e+00> : vector<16x32xf32>
    %226 = tpu.matmul %210, %189, %cst_33 {dimension_numbers = #tpu.dot_dimension_numbers<[1], [0], [0], [1], [0, 0, 1, 1], [], []>} : vector<16x2xf32>, vector<2x32xf32>, vector<16x32xf32> -> vector<16x32xf32>
    %227 = arith.mulf %226, %163 : vector<16x32xf32>
    %228 = vector.extract_strided_slice %227 {offsets = [0, 0], sizes = [2, 32], strides = [1, 1]} : vector<16x32xf32> to vector<2x32xf32>
    %229 = vector.extract_strided_slice %227 {offsets = [2, 0], sizes = [2, 32], strides = [1, 1]} : vector<16x32xf32> to vector<2x32xf32>
    %230 = arith.addf %228, %229 : vector<2x32xf32>
    %231 = vector.extract_strided_slice %227 {offsets = [4, 0], sizes = [2, 32], strides = [1, 1]} : vector<16x32xf32> to vector<2x32xf32>
    %232 = arith.addf %230, %231 : vector<2x32xf32>
    %233 = vector.extract_strided_slice %227 {offsets = [6, 0], sizes = [2, 32], strides = [1, 1]} : vector<16x32xf32> to vector<2x32xf32>
    %234 = arith.addf %232, %233 : vector<2x32xf32>
    %235 = vector.extract_strided_slice %227 {offsets = [8, 0], sizes = [2, 32], strides = [1, 1]} : vector<16x32xf32> to vector<2x32xf32>
    %236 = arith.addf %234, %235 : vector<2x32xf32>
    %237 = vector.extract_strided_slice %227 {offsets = [10, 0], sizes = [2, 32], strides = [1, 1]} : vector<16x32xf32> to vector<2x32xf32>
    %238 = arith.addf %236, %237 : vector<2x32xf32>
    %239 = vector.extract_strided_slice %227 {offsets = [12, 0], sizes = [2, 32], strides = [1, 1]} : vector<16x32xf32> to vector<2x32xf32>
    %240 = arith.addf %238, %239 : vector<2x32xf32>
    %241 = vector.extract_strided_slice %227 {offsets = [14, 0], sizes = [2, 32], strides = [1, 1]} : vector<16x32xf32> to vector<2x32xf32>
    %242 = arith.addf %240, %241 : vector<2x32xf32>
    %cst_34 = arith.constant dense<0.000000e+00> : vector<2x32xf32>
    %243 = tpu.matmul %225, %189, %cst_34 {dimension_numbers = #tpu.dot_dimension_numbers<[1], [0], [0], [1], [0, 0, 1, 1], [], []>} : vector<2x2xf32>, vector<2x32xf32>, vector<2x32xf32> -> vector<2x32xf32>
    %244 = arith.divf %242, %243 : vector<2x32xf32>
    %cst_35 = arith.constant dense<0.000000e+00> : vector<2x128xf32>
    %245 = tpu.matmul %244, %3, %cst_35 {dimension_numbers = #tpu.dot_dimension_numbers<[1], [0], [0], [1], [0, 0, 1, 1], [], []>} : vector<2x32xf32>, vector<32x128xf32>, vector<2x128xf32> -> vector<2x128xf32>
    %246 = vector.broadcast %6 : vector<1x128xf32> to vector<2x128xf32>
    %247 = arith.addf %245, %246 : vector<2x128xf32>
    %248 = vector.extract_strided_slice %247 {offsets = [0, 0], sizes = [2, 4], strides = [1, 1]} : vector<2x128xf32> to vector<2x4xf32>
    %c0_36 = arith.constant 0 : index
    %c0_37 = arith.constant 0 : index
    %249 = vector.load %arg2[%c0_36, %c0_37] : memref<2x4xf32, #tpu.memory_space<vmem>>, vector<2x4xf32>
    tpu.vector_store %arg2[%c0_36, %c0_37], %248 {strides = array<i32>} : memref<2x4xf32, #tpu.memory_space<vmem>>, vector<2x4xf32>,
    return
  }
}

</mosaic_0001>

<llo_original>
// kernel: lstm_attention_forward.1
$region0: #{lstm_attention_forward.1}
  #allocation0 [shape = 'u32[]', space=smem, size = 0x4, offset = 0x4, fixed_abs, tag = 'smem constant byte address 0x4 - core index']
  #allocation1 [shape = 'u32[144,128]{1,0:T(1,128)}', space=vmem, size = 0x12000, scoped, tag = 'internal scratch']
  %s0 = inlined_call_operand.vmem [shape: f32[16,4], index: 0, kind: input, shape index: {}]
  %s1 = inlined_call_operand.hbm [shape: f32[112,128], index: 1, kind: input, shape index: {}]
  %s2 = inlined_call_operand.hbm [shape: f32[2,4], index: 2, kind: output, shape index: {}]
  %s3 = sld [smem:[#allocation0]]
  $region22: #{lstm_attention_forward.1} parent=0
    _
  %s5 = ssub.s32 1, %s3
  %s6 = scalar_select 0, %s5, %s3
  $region1: #{lstm_attention_forward.1} parent=0
    #allocation2 [shape = 'u8[57344]{0}', space=vmem, size = 0xe000, scoped, tag = 'input window, operand 1, single buffered']
    #allocation3 [shape = 's32[1]{0}', space=sflag, size = 0x4, scoped, tag = 'scoped memory for lstm_attention_forward.1']
    #allocation4 [shape = 's32[1]{0}', space=sflag, size = 0x4, scoped, tag = 'scoped memory for lstm_attention_forward.1']
    #allocation5 [shape = 'u8[1024]{0}', space=vmem, size = 0x400, scoped, tag = 'output window, operand 0, single buffered']
    %7 = vsyncpa [#allocation3], 0
    %8 = vsyncpa [#allocation4], 0
    // Predicated region
    $region2: #{lstm_attention_forward.1} parent=1 // pred_check
      _
    $region3: #{lstm_attention_forward.1} parent=1 // pred_check_branch
      %10 = sbr.rel (0) target = $region5
    $region4: #{lstm_attention_forward.1} parent=1 // pred_region
      _
    $region5: #{lstm_attention_forward.1} parent=1 // pred_fallthru
      _
    // Predicated region
    $region6: #{lstm_attention_forward.1} parent=1 // pred_check
      _
    $region7: #{lstm_attention_forward.1} parent=1 // pred_check_branch
      %12 = sbr.rel (0) target = $region9
    $region8: #{lstm_attention_forward.1} parent=1 // pred_region
      %s14 = ssub.s32 1792, 1792
      %15 = vsyncadd [#allocation3], %s14
      %s16 = sshll.u32 [#allocation2], 4
      %s17 = int_to_ptr.vmem [resolvable:$true] %s16
      %22 = dma.hbm_to_vmem [thread:$0]  %s1, 1792, %s17, [#allocation3], 128, 128, 8
    $region9: #{lstm_attention_forward.1} parent=1 // pred_fallthru
      _
    // Predicated region
    $region10: #{lstm_attention_forward.1} parent=1 // pred_check
      _
    $region11: #{lstm_attention_forward.1} parent=1 // pred_check_branch
      %24 = sbr.rel (0) target = $region13
    $region12: #{lstm_attention_forward.1} parent=1 // pred_region
      %25 = dma.done [#allocation3], 1792
    $region13: #{lstm_attention_forward.1} parent=1 // pred_fallthru
      _
    %v26 = vld [vmem:[#allocation2] sm:$0xf]
    %v27 = vld [vmem:[#allocation2 + $0x8] sm:$0xff]
    %v28 = vld [vmem:[#allocation2 + $0x10] sm:$0xff]
    %v29 = vld [vmem:[#allocation2 + $0x18] sm:$0xff]
    %v30 = vld [vmem:[#allocation2 + $0x20] sm:$0xff]
    %v31 = vld [vmem:[#allocation2 + $0x28] sm:$0xff]
    %v32 = vld [vmem:[#allocation2 + $0x30] sm:$0xff]
    %v33 = vld [vmem:[#allocation2 + $0x38] sm:$0xff]
    %v34 = vld [vmem:[#allocation2 + $0x40] sm:$0xff]
    %v35 = vld [vmem:[#allocation2 + $0x48] sm:$0xff]
    %v36 = vld [vmem:[#allocation2 + $0x50] sm:$0xff]
    %v37 = vld [vmem:[#allocation2 + $0x58] sm:$0xff]
    %v38 = vld [vmem:[#allocation2 + $0x60] sm:$0xff]
    %v39 = vld [vmem:[#allocation2 + $0x68] sm:$0x1]
    %v40 = vld [vmem:[#allocation2 + $0x69] sm:$0x1]
    %v41 = vld [vmem:[#allocation2 + $0x6a] sm:$0x1]
    %v42 = vld [vmem:[%s0] sm:$0xff]
    %v43 = vld [vmem:[%s0 + $0x8] sm:$0xff]
    %v44 = vlaneseq
    %v45 = vshrl.u32 %v44, 7
    %v46 = vsub.s32 0, %v45
    %v47 = vrot.slane %v39, %v46
    %vm48 = vcmask 31744
    %v50 = vsel %vm48, %v42, 0
    %v53 = vsel %vm48, %v43, 0
    %vm55 = vcmask 1043456
    %v57 = vsel %vm55, %v26, 0
    %59 = vmatprep.subr.mxu0 0.0
    %60 = vmatpush1.msra.mxu0 %v57
    %61 = vmatprep.subr.mxu0 0.0
    %62 = vmatpush1.msra.mxu0 0.0
    %63 = vmatprep.subr.mxu0 0.0
    %64 = vmatpush1.msra.mxu0 0.0
    %65 = vmatprep.subr.mxu0 0.0
    %66 = vmatpush1.msra.mxu0 0.0
    %67 = vmatprep.subr.mxu0 0.0
    %68 = vmatpush1.msra.mxu0 0.0
    %69 = vmatprep.subr.mxu0 0.0
    %70 = vmatpush1.msra.mxu0 0.0
    %71 = vmatprep.subr.mxu0 0.0
    %72 = vmatpush1.msra.mxu0 0.0
    %73 = vmatprep.subr.mxu0 0.0
    %74 = vmatpush1.msra.mxu0 0.0
    %75 = vmatprep.subr.mxu0 0.0
    %76 = vmatpush1.msra.mxu0 0.0
    %77 = vmatprep.subr.mxu0 0.0
    %78 = vmatpush1.msra.mxu0 0.0
    %79 = vmatprep.subr.mxu0 0.0
    %80 = vmatpush1.msra.mxu0 0.0
    %81 = vmatprep.subr.mxu0 0.0
    %82 = vmatpush1.msra.mxu0 0.0
    %83 = vmatprep.subr.mxu0 0.0
    %84 = vmatpush1.msra.mxu0 0.0
    %85 = vmatprep.subr.mxu0 0.0
    %86 = vmatpush1.msra.mxu0 0.0
    %87 = vmatprep.subr.mxu0 0.0
    %88 = vmatpush1.msra.mxu0 0.0
    %89 = vmatprep.subr.mxu0 0.0
    %90 = vmatpush1.msra.mxu0 0.0
    %91 = vmatprep.subr.mxu0 0.0
    %92 = vmatpush1.msra.mxu0 0.0
    %93 = vmatprep.subr.mxu0 0.0
    %94 = vmatpush1.msra.mxu0 0.0
    %95 = vmatprep.subr.mxu0 0.0
    %96 = vmatpush1.msra.mxu0 0.0
    %97 = vmatprep.subr.mxu0 0.0
    %98 = vmatpush1.msra.mxu0 0.0
    %99 = vmatprep.subr.mxu0 0.0
    %100 = vmatpush1.msra.mxu0 0.0
    %101 = vmatprep.subr.mxu0 0.0
    %102 = vmatpush1.msra.mxu0 0.0
    %103 = vmatprep.subr.mxu0 0.0
    %104 = vmatpush1.msra.mxu0 0.0
    %105 = vmatprep.subr.mxu0 0.0
    %106 = vmatpush1.msra.mxu0 0.0
    %107 = vmatprep.subr.mxu0 0.0
    %108 = vmatpush1.msra.mxu0 0.0
    %109 = vmatprep.subr.mxu0 0.0
    %110 = vmatpush1.msra.mxu0 0.0
    %111 = vmatprep.subr.mxu0 0.0
    %112 = vmatpush1.msra.mxu0 0.0
    %113 = vmatprep.subr.mxu0 0.0
    %114 = vmatpush1.msra.mxu0 0.0
    %115 = vmatprep.subr.mxu0 0.0
    %116 = vmatpush1.msra.mxu0 0.0
    %117 = vmatprep.subr.mxu0 0.0
    %118 = vmatpush1.msra.mxu0 0.0
    %119 = vmatprep.subr.mxu0 0.0
    %120 = vmatpush1.msra.mxu0 0.0
    %121 = vmatprep.subr.mxu0 0.0
    %122 = vmatpush1.msra.mxu0 0.0
    %123 = vmatprep.mubr.f32.mxu0 0.0
    %124 = vmatmul.mubr.f32.gmra.mrb[0].mxu0 %v50
    %v125 = vpop.f32.mrb[0].mxu0
    %v126 = vadd.f32 %v47, %v125
    %v127 = vpop.f32.mrb[0].mxu0
    %128 = vmatprep.mubr.f32.mxu0 0.0
    %129 = vmatmul.mubr.f32.gmra.mrb[0].mxu0 %v53
    %v130 = vpop.f32.mrb[0].mxu0
    %v131 = vadd.f32 %v47, %v130
    %v132 = vpop.f32.mrb[0].mxu0
    %133 = vdwg.mxu0
    %vm134 = vcmask 261120
    %v136 = vsel %vm134, 0.0, 0
    %138 = vmatprep.subr.mxu0 0.0
    %139 = vmatpush1.msra.mxu0 %v27
    %140 = vmatprep.subr.mxu0 0.0
    %141 = vmatpush1.msra.mxu0 %v28
    %142 = vmatprep.subr.mxu0 0.0
    %143 = vmatpush1.msra.mxu0 %v29
    %144 = vmatprep.subr.mxu0 0.0
    %145 = vmatpush1.msra.mxu0 %v30
    %146 = vmatprep.subr.mxu0 0.0
    %147 = vmatpush1.msra.mxu0 0.0
    %148 = vmatprep.subr.mxu0 0.0
    %149 = vmatpush1.msra.mxu0 0.0
    %150 = vmatprep.subr.mxu0 0.0
    %151 = vmatpush1.msra.mxu0 0.0
    %152 = vmatprep.subr.mxu0 0.0
    %153 = vmatpush1.msra.mxu0 0.0
    %154 = vmatprep.subr.mxu0 0.0
    %155 = vmatpush1.msra.mxu0 0.0
    %156 = vmatprep.subr.mxu0 0.0
    %157 = vmatpush1.msra.mxu0 0.0
    %158 = vmatprep.subr.mxu0 0.0
    %159 = vmatpush1.msra.mxu0 0.0
    %160 = vmatprep.subr.mxu0 0.0
    %161 = vmatpush1.msra.mxu0 0.0
    %162 = vmatprep.subr.mxu0 0.0
    %163 = vmatpush1.msra.mxu0 0.0
    %164 = vmatprep.subr.mxu0 0.0
    %165 = vmatpush1.msra.mxu0 0.0
    %166 = vmatprep.subr.mxu0 0.0
    %167 = vmatpush1.msra.mxu0 0.0
    %168 = vmatprep.subr.mxu0 0.0
    %169 = vmatpush1.msra.mxu0 0.0
    %170 = vmatprep.subr.mxu0 0.0
    %171 = vmatpush1.msra.mxu0 0.0
    %172 = vmatprep.subr.mxu0 0.0
    %173 = vmatpush1.msra.mxu0 0.0
    %174 = vmatprep.subr.mxu0 0.0
    %175 = vmatpush1.msra.mxu0 0.0
    %176 = vmatprep.subr.mxu0 0.0
    %177 = vmatpush1.msra.mxu0 0.0
    %178 = vmatprep.subr.mxu0 0.0
    %179 = vmatpush1.msra.mxu0 0.0
    %180 = vmatprep.subr.mxu0 0.0
    %181 = vmatpush1.msra.mxu0 0.0
    %182 = vmatprep.subr.mxu0 0.0
    %183 = vmatpush1.msra.mxu0 0.0
    %184 = vmatprep.subr.mxu0 0.0
    %185 = vmatpush1.msra.mxu0 0.0
    %186 = vmatprep.subr.mxu0 0.0
    %187 = vmatpush1.msra.mxu0 0.0
    %188 = vmatprep.subr.mxu0 0.0
    %189 = vmatpush1.msra.mxu0 0.0
    %190 = vmatprep.subr.mxu0 0.0
    %191 = vmatpush1.msra.mxu0 0.0
    %192 = vmatprep.subr.mxu0 0.0
    %193 = vmatpush1.msra.mxu0 0.0
    %194 = vmatprep.subr.mxu0 0.0
    %195 = vmatpush1.msra.mxu0 0.0
    %196 = vmatprep.subr.mxu0 0.0
    %197 = vmatpush1.msra.mxu0 0.0
    %198 = vmatprep.subr.mxu0 0.0
    %199 = vmatpush1.msra.mxu0 0.0
    %200 = vmatprep.subr.mxu0 0.0
    %201 = vmatpush1.msra.mxu0 0.0
    %202 = vmatprep.mubr.f32.mxu0 0.0
    %203 = vmatmul.mubr.f32.gmra.mrb[0].mxu0 %v136
    %v204 = vpop.f32.mrb[0].mxu0
    %v205 = vadd.f32 0.0, %v204
    %v206 = vpop.f32.mrb[0].mxu0
    %207 = vdwg.mxu0
    %v208 = vadd.f32 %v126, %v205
    %v209 = vxor.u32 %v208, 2147483648
    %v210 = vmul.f32 %v209, 1.442695
    %v211 = vpow.pop %v210
    %v212 = vadd.f32 %v211, 1.0
    %v213 = vrcp.pop %v212
    %v214 = vmul.f32 1.0, %v213
    %v215 = vtanh.pop %v208
    %v216 = vmul.f32 %v214, 0.0
    %218 = vrot.lane.b32.xlu0 %v215, 64
    %v219 = vpop.permute.xlu0 %218
    %v221 = vmul.f32 %v214, %v219
    %223 = vrot.lane.b32.xlu0 %v221, 32
    %v224 = vpop.permute.xlu0 %223
    %v226 = vadd.f32 %v216, %v224
    %v227 = vtanh.pop %v226
    %229 = vrot.lane.b32.xlu0 %v227, 64
    %v230 = vpop.permute.xlu0 %229
    %v232 = vmul.f32 %v214, %v230
    %234 = vrot.lane.b32.xlu0 %v232, 32
    %v235 = vpop.permute.xlu0 %234
    %v236 = vsel %vm134, %v235, 0
    %238 = vmatprep.subr.mxu0 0.0
    %239 = vmatpush1.msra.mxu0 %v27
    %240 = vmatprep.subr.mxu0 0.0
    %241 = vmatpush1.msra.mxu0 %v28
    %242 = vmatprep.subr.mxu0 0.0
    %243 = vmatpush1.msra.mxu0 %v29
    %244 = vmatprep.subr.mxu0 0.0
    %245 = vmatpush1.msra.mxu0 %v30
    %246 = vmatprep.subr.mxu0 0.0
    %247 = vmatpush1.msra.mxu0 0.0
    %248 = vmatprep.subr.mxu0 0.0
    %249 = vmatpush1.msra.mxu0 0.0
    %250 = vmatprep.subr.mxu0 0.0
    %251 = vmatpush1.msra.mxu0 0.0
    %252 = vmatprep.subr.mxu0 0.0
    %253 = vmatpush1.msra.mxu0 0.0
    %254 = vmatprep.subr.mxu0 0.0
    %255 = vmatpush1.msra.mxu0 0.0
    %256 = vmatprep.subr.mxu0 0.0
    %257 = vmatpush1.msra.mxu0 0.0
    %258 = vmatprep.subr.mxu0 0.0
    %259 = vmatpush1.msra.mxu0 0.0
    %260 = vmatprep.subr.mxu0 0.0
    %261 = vmatpush1.msra.mxu0 0.0
    %262 = vmatprep.subr.mxu0 0.0
    %263 = vmatpush1.msra.mxu0 0.0
    %264 = vmatprep.subr.mxu0 0.0
    %265 = vmatpush1.msra.mxu0 0.0
    %266 = vmatprep.subr.mxu0 0.0
    %267 = vmatpush1.msra.mxu0 0.0
    %268 = vmatprep.subr.mxu0 0.0
    %269 = vmatpush1.msra.mxu0 0.0
    %270 = vmatprep.subr.mxu0 0.0
    %271 = vmatpush1.msra.mxu0 0.0
    %272 = vmatprep.subr.mxu0 0.0
    %273 = vmatpush1.msra.mxu0 0.0
    %274 = vmatprep.subr.mxu0 0.0
    %275 = vmatpush1.msra.mxu0 0.0
    %276 = vmatprep.subr.mxu0 0.0
    %277 = vmatpush1.msra.mxu0 0.0
    %278 = vmatprep.subr.mxu0 0.0
    %279 = vmatpush1.msra.mxu0 0.0
    %280 = vmatprep.subr.mxu0 0.0
    %281 = vmatpush1.msra.mxu0 0.0
    %282 = vmatprep.subr.mxu0 0.0
    %283 = vmatpush1.msra.mxu0 0.0
    %284 = vmatprep.subr.mxu0 0.0
    %285 = vmatpush1.msra.mxu0 0.0
    %286 = vmatprep.subr.mxu0 0.0
    %287 = vmatpush1.msra.mxu0 0.0
    %288 = vmatprep.subr.mxu0 0.0
    %289 = vmatpush1.msra.mxu0 0.0
    %290 = vmatprep.subr.mxu0 0.0
    %291 = vmatpush1.msra.mxu0 0.0
    %292 = vmatprep.subr.mxu0 0.0
    %293 = vmatpush1.msra.mxu0 0.0
    %294 = vmatprep.subr.mxu0 0.0
    %295 = vmatpush1.msra.mxu0 0.0
    %296 = vmatprep.subr.mxu0 0.0
    %297 = vmatpush1.msra.mxu0 0.0
    %298 = vmatprep.subr.mxu0 0.0
    %299 = vmatpush1.msra.mxu0 0.0
    %300 = vmatprep.subr.mxu0 0.0
    %301 = vmatpush1.msra.mxu0 0.0
    %302 = vmatprep.mubr.f32.mxu0 0.0
    %303 = vmatmul.mubr.f32.gmra.mrb[0].mxu0 %v236
    %v304 = vpop.f32.mrb[0].mxu0
    %v305 = vadd.f32 0.0, %v304
    %v306 = vpop.f32.mrb[0].mxu0
    %307 = vdwg.mxu0
    %v309 = vrot.slane %v305, 6
    %v311 = vadd.f32 %v126, %v309
    %v312 = vxor.u32 %v311, 2147483648
    %v313 = vmul.f32 %v312, 1.442695
    %v314 = vpow.pop %v313
    %v315 = vadd.f32 %v314, 1.0
    %v316 = vrcp.pop %v315
    %v317 = vmul.f32 1.0, %v316
    %v318 = vtanh.pop %v311
    %v320 = vrot.slane %v226, 6
    %v322 = vmul.f32 %v317, %v320
    %324 = vrot.lane.b32.xlu0 %v318, 64
    %v325 = vpop.permute.xlu0 %324
    %v327 = vmul.f32 %v317, %v325
    %329 = vrot.lane.b32.xlu0 %v327, 32
    %v330 = vpop.permute.xlu0 %329
    %v332 = vadd.f32 %v322, %v330
    %v333 = vtanh.pop %v332
    %335 = vrot.lane.b32.xlu0 %v333, 64
    %v336 = vpop.permute.xlu0 %335
    %v338 = vmul.f32 %v317, %v336
    %v340 = vrot.slane %v338, 2
    %341 = vrot.lane.b32.xlu0 %v340, 32
    %v342 = vpop.permute.xlu0 %341
    %v343 = vsel %vm134, %v342, 0
    %345 = vmatprep.subr.mxu0 0.0
    %346 = vmatpush1.msra.mxu0 %v27
    %347 = vmatprep.subr.mxu0 0.0
    %348 = vmatpush1.msra.mxu0 %v28
    %349 = vmatprep.subr.mxu0 0.0
    %350 = vmatpush1.msra.mxu0 %v29
    %351 = vmatprep.subr.mxu0 0.0
    %352 = vmatpush1.msra.mxu0 %v30
    %353 = vmatprep.subr.mxu0 0.0
    %354 = vmatpush1.msra.mxu0 0.0
    %355 = vmatprep.subr.mxu0 0.0
    %356 = vmatpush1.msra.mxu0 0.0
    %357 = vmatprep.subr.mxu0 0.0
    %358 = vmatpush1.msra.mxu0 0.0
    %359 = vmatprep.subr.mxu0 0.0
    %360 = vmatpush1.msra.mxu0 0.0
    %361 = vmatprep.subr.mxu0 0.0
    %362 = vmatpush1.msra.mxu0 0.0
    %363 = vmatprep.subr.mxu0 0.0
    %364 = vmatpush1.msra.mxu0 0.0
    %365 = vmatprep.subr.mxu0 0.0
    %366 = vmatpush1.msra.mxu0 0.0
    %367 = vmatprep.subr.mxu0 0.0
    %368 = vmatpush1.msra.mxu0 0.0
    %369 = vmatprep.subr.mxu0 0.0
    %370 = vmatpush1.msra.mxu0 0.0
    %371 = vmatprep.subr.mxu0 0.0
    %372 = vmatpush1.msra.mxu0 0.0
    %373 = vmatprep.subr.mxu0 0.0
    %374 = vmatpush1.msra.mxu0 0.0
    %375 = vmatprep.subr.mxu0 0.0
    %376 = vmatpush1.msra.mxu0 0.0
    %377 = vmatprep.subr.mxu0 0.0
    %378 = vmatpush1.msra.mxu0 0.0
    %379 = vmatprep.subr.mxu0 0.0
    %380 = vmatpush1.msra.mxu0 0.0
    %381 = vmatprep.subr.mxu0 0.0
    %382 = vmatpush1.msra.mxu0 0.0
    %383 = vmatprep.subr.mxu0 0.0
    %384 = vmatpush1.msra.mxu0 0.0
    %385 = vmatprep.subr.mxu0 0.0
    %386 = vmatpush1.msra.mxu0 0.0
    %387 = vmatprep.subr.mxu0 0.0
    %388 = vmatpush1.msra.mxu0 0.0
    %389 = vmatprep.subr.mxu0 0.0
    %390 = vmatpush1.msra.mxu0 0.0
    %391 = vmatprep.subr.mxu0 0.0
    %392 = vmatpush1.msra.mxu0 0.0
    %393 = vmatprep.subr.mxu0 0.0
    %394 = vmatpush1.msra.mxu0 0.0
    %395 = vmatprep.subr.mxu0 0.0
    %396 = vmatpush1.msra.mxu0 0.0
    %397 = vmatprep.subr.mxu0 0.0
    %398 = vmatpush1.msra.mxu0 0.0
    %399 = vmatprep.subr.mxu0 0.0
    %400 = vmatpush1.msra.mxu0 0.0
    %401 = vmatprep.subr.mxu0 0.0
    %402 = vmatpush1.msra.mxu0 0.0
    %403 = vmatprep.subr.mxu0 0.0
    %404 = vmatpush1.msra.mxu0 0.0
    %405 = vmatprep.subr.mxu0 0.0
    %406 = vmatpush1.msra.mxu0 0.0
    %407 = vmatprep.subr.mxu0 0.0
    %408 = vmatpush1.msra.mxu0 0.0
    %409 = vmatprep.mubr.f32.mxu0 0.0
    %410 = vmatmul.mubr.f32.gmra.mrb[0].mxu0 %v343
    %v411 = vpop.f32.mrb[0].mxu0
    %v412 = vadd.f32 0.0, %v411
    %v413 = vpop.f32.mrb[0].mxu0
    %414 = vdwg.mxu0
    %v416 = vrot.slane %v412, 4
    %v418 = vadd.f32 %v126, %v416
    %v419 = vxor.u32 %v418, 2147483648
    %v420 = vmul.f32 %v419, 1.442695
    %v421 = vpow.pop %v420
    %v422 = vadd.f32 %v421, 1.0
    %v423 = vrcp.pop %v422
    %v424 = vmul.f32 1.0, %v423
    %v425 = vtanh.pop %v418
    %v427 = vrot.slane %v332, 6
    %v429 = vmul.f32 %v424, %v427
    %431 = vrot.lane.b32.xlu0 %v425, 64
    %v432 = vpop.permute.xlu0 %431
    %v434 = vmul.f32 %v424, %v432
    %436 = vrot.lane.b32.xlu0 %v434, 32
    %v437 = vpop.permute.xlu0 %436
    %v439 = vadd.f32 %v429, %v437
    %v440 = vtanh.pop %v439
    %442 = vrot.lane.b32.xlu0 %v440, 64
    %v443 = vpop.permute.xlu0 %442
    %v445 = vmul.f32 %v424, %v443
    %v447 = vrot.slane %v445, 4
    %448 = vrot.lane.b32.xlu0 %v447, 32
    %v449 = vpop.permute.xlu0 %448
    %v450 = vsel %vm134, %v449, 0
    %452 = vmatprep.subr.mxu0 0.0
    %453 = vmatpush1.msra.mxu0 %v27
    %454 = vmatprep.subr.mxu0 0.0
    %455 = vmatpush1.msra.mxu0 %v28
    %456 = vmatprep.subr.mxu0 0.0
    %457 = vmatpush1.msra.mxu0 %v29
    %458 = vmatprep.subr.mxu0 0.0
    %459 = vmatpush1.msra.mxu0 %v30
    %460 = vmatprep.subr.mxu0 0.0
    %461 = vmatpush1.msra.mxu0 0.0
    %462 = vmatprep.subr.mxu0 0.0
    %463 = vmatpush1.msra.mxu0 0.0
    %464 = vmatprep.subr.mxu0 0.0
    %465 = vmatpush1.msra.mxu0 0.0
    %466 = vmatprep.subr.mxu0 0.0
    %467 = vmatpush1.msra.mxu0 0.0
    %468 = vmatprep.subr.mxu0 0.0
    %469 = vmatpush1.msra.mxu0 0.0
    %470 = vmatprep.subr.mxu0 0.0
    %471 = vmatpush1.msra.mxu0 0.0
    %472 = vmatprep.subr.mxu0 0.0
    %473 = vmatpush1.msra.mxu0 0.0
    %474 = vmatprep.subr.mxu0 0.0
    %475 = vmatpush1.msra.mxu0 0.0
    %476 = vmatprep.subr.mxu0 0.0
    %477 = vmatpush1.msra.mxu0 0.0
    %478 = vmatprep.subr.mxu0 0.0
    %479 = vmatpush1.msra.mxu0 0.0
    %480 = vmatprep.subr.mxu0 0.0
    %481 = vmatpush1.msra.mxu0 0.0
    %482 = vmatprep.subr.mxu0 0.0
    %483 = vmatpush1.msra.mxu0 0.0
    %484 = vmatprep.subr.mxu0 0.0
    %485 = vmatpush1.msra.mxu0 0.0
    %486 = vmatprep.subr.mxu0 0.0
    %487 = vmatpush1.msra.mxu0 0.0
    %488 = vmatprep.subr.mxu0 0.0
    %489 = vmatpush1.msra.mxu0 0.0
    %490 = vmatprep.subr.mxu0 0.0
    %491 = vmatpush1.msra.mxu0 0.0
    %492 = vmatprep.subr.mxu0 0.0
    %493 = vmatpush1.msra.mxu0 0.0
    %494 = vmatprep.subr.mxu0 0.0
    %495 = vmatpush1.msra.mxu0 0.0
    %496 = vmatprep.subr.mxu0 0.0
    %497 = vmatpush1.msra.mxu0 0.0
    %498 = vmatprep.subr.mxu0 0.0
    %499 = vmatpush1.msra.mxu0 0.0
    %500 = vmatprep.subr.mxu0 0.0
    %501 = vmatpush1.msra.mxu0 0.0
    %502 = vmatprep.subr.mxu0 0.0
    %503 = vmatpush1.msra.mxu0 0.0
    %504 = vmatprep.subr.mxu0 0.0
    %505 = vmatpush1.msra.mxu0 0.0
    %506 = vmatprep.subr.mxu0 0.0
    %507 = vmatpush1.msra.mxu0 0.0
    %508 = vmatprep.subr.mxu0 0.0
    %509 = vmatpush1.msra.mxu0 0.0
    %510 = vmatprep.subr.mxu0 0.0
    %511 = vmatpush1.msra.mxu0 0.0
    %512 = vmatprep.subr.mxu0 0.0
    %513 = vmatpush1.msra.mxu0 0.0
    %514 = vmatprep.subr.mxu0 0.0
    %515 = vmatpush1.msra.mxu0 0.0
    %516 = vmatprep.mubr.f32.mxu0 0.0
    %517 = vmatmul.mubr.f32.gmra.mrb[0].mxu0 %v450
    %v518 = vpop.f32.mrb[0].mxu0
    %v519 = vadd.f32 0.0, %v518
    %v520 = vpop.f32.mrb[0].mxu0
    %521 = vdwg.mxu0
    %v523 = vrot.slane %v519, 2
    %v525 = vadd.f32 %v126, %v523
    %v526 = vxor.u32 %v525, 2147483648
    %v527 = vmul.f32 %v526, 1.442695
    %v528 = vpow.pop %v527
    %v529 = vadd.f32 %v528, 1.0
    %v530 = vrcp.pop %v529
    %v531 = vmul.f32 1.0, %v530
    %v532 = vtanh.pop %v525
    %v534 = vrot.slane %v439, 6
    %v536 = vmul.f32 %v531, %v534
    %538 = vrot.lane.b32.xlu0 %v532, 64
    %v539 = vpop.permute.xlu0 %538
    %v541 = vmul.f32 %v531, %v539
    %543 = vrot.lane.b32.xlu0 %v541, 32
    %v544 = vpop.permute.xlu0 %543
    %v546 = vadd.f32 %v536, %v544
    %v547 = vtanh.pop %v546
    %549 = vrot.lane.b32.xlu0 %v547, 64
    %v550 = vpop.permute.xlu0 %549
    %v552 = vmul.f32 %v531, %v550
    %v554 = vrot.slane %v552, 6
    %555 = vrot.lane.b32.xlu0 %v554, 32
    %v556 = vpop.permute.xlu0 %555
    %v557 = vsel %vm134, %v556, 0
    %559 = vmatprep.subr.mxu0 0.0
    %560 = vmatpush1.msra.mxu0 %v27
    %561 = vmatprep.subr.mxu0 0.0
    %562 = vmatpush1.msra.mxu0 %v28
    %563 = vmatprep.subr.mxu0 0.0
    %564 = vmatpush1.msra.mxu0 %v29
    %565 = vmatprep.subr.mxu0 0.0
    %566 = vmatpush1.msra.mxu0 %v30
    %567 = vmatprep.subr.mxu0 0.0
    %568 = vmatpush1.msra.mxu0 0.0
    %569 = vmatprep.subr.mxu0 0.0
    %570 = vmatpush1.msra.mxu0 0.0
    %571 = vmatprep.subr.mxu0 0.0
    %572 = vmatpush1.msra.mxu0 0.0
    %573 = vmatprep.subr.mxu0 0.0
    %574 = vmatpush1.msra.mxu0 0.0
    %575 = vmatprep.subr.mxu0 0.0
    %576 = vmatpush1.msra.mxu0 0.0
    %577 = vmatprep.subr.mxu0 0.0
    %578 = vmatpush1.msra.mxu0 0.0
    %579 = vmatprep.subr.mxu0 0.0
    %580 = vmatpush1.msra.mxu0 0.0
    %581 = vmatprep.subr.mxu0 0.0
    %582 = vmatpush1.msra.mxu0 0.0
    %583 = vmatprep.subr.mxu0 0.0
    %584 = vmatpush1.msra.mxu0 0.0
    %585 = vmatprep.subr.mxu0 0.0
    %586 = vmatpush1.msra.mxu0 0.0
    %587 = vmatprep.subr.mxu0 0.0
    %588 = vmatpush1.msra.mxu0 0.0
    %589 = vmatprep.subr.mxu0 0.0
    %590 = vmatpush1.msra.mxu0 0.0
    %591 = vmatprep.subr.mxu0 0.0
    %592 = vmatpush1.msra.mxu0 0.0
    %593 = vmatprep.subr.mxu0 0.0
    %594 = vmatpush1.msra.mxu0 0.0
    %595 = vmatprep.subr.mxu0 0.0
    %596 = vmatpush1.msra.mxu0 0.0
    %597 = vmatprep.subr.mxu0 0.0
    %598 = vmatpush1.msra.mxu0 0.0
    %599 = vmatprep.subr.mxu0 0.0
    %600 = vmatpush1.msra.mxu0 0.0
    %601 = vmatprep.subr.mxu0 0.0
    %602 = vmatpush1.msra.mxu0 0.0
    %603 = vmatprep.subr.mxu0 0.0
    %604 = vmatpush1.msra.mxu0 0.0
    %605 = vmatprep.subr.mxu0 0.0
    %606 = vmatpush1.msra.mxu0 0.0
    %607 = vmatprep.subr.mxu0 0.0
    %608 = vmatpush1.msra.mxu0 0.0
    %609 = vmatprep.subr.mxu0 0.0
    %610 = vmatpush1.msra.mxu0 0.0
    %611 = vmatprep.subr.mxu0 0.0
    %612 = vmatpush1.msra.mxu0 0.0
    %613 = vmatprep.subr.mxu0 0.0
    %614 = vmatpush1.msra.mxu0 0.0
    %615 = vmatprep.subr.mxu0 0.0
    %616 = vmatpush1.msra.mxu0 0.0
    %617 = vmatprep.subr.mxu0 0.0
    %618 = vmatpush1.msra.mxu0 0.0
    %619 = vmatprep.subr.mxu0 0.0
    %620 = vmatpush1.msra.mxu0 0.0
    %621 = vmatprep.subr.mxu0 0.0
    %622 = vmatpush1.msra.mxu0 0.0
    %623 = vmatprep.mubr.f32.mxu0 0.0
    %624 = vmatmul.mubr.f32.gmra.mrb[0].mxu0 %v557
    %v625 = vpop.f32.mrb[0].mxu0
    %v626 = vadd.f32 0.0, %v625
    %v627 = vpop.f32.mrb[0].mxu0
    %628 = vdwg.mxu0
    %v629 = vadd.f32 %v131, %v626
    %v630 = vxor.u32 %v629, 2147483648
    %v631 = vmul.f32 %v630, 1.442695
    %v632 = vpow.pop %v631
    %v633 = vadd.f32 %v632, 1.0
    %v634 = vrcp.pop %v633
    %v635 = vmul.f32 1.0, %v634
    %v636 = vtanh.pop %v629
    %v638 = vrot.slane %v546, 6
    %v640 = vmul.f32 %v635, %v638
    %642 = vrot.lane.b32.xlu0 %v636, 64
    %v643 = vpop.permute.xlu0 %642
    %v645 = vmul.f32 %v635, %v643
    %647 = vrot.lane.b32.xlu0 %v645, 32
    %v648 = vpop.permute.xlu0 %647
    %v650 = vadd.f32 %v640, %v648
    %v651 = vtanh.pop %v650
    %653 = vrot.lane.b32.xlu0 %v651, 64
    %v654 = vpop.permute.xlu0 %653
    %v656 = vmul.f32 %v635, %v654
    %658 = vrot.lane.b32.xlu0 %v656, 32
    %v659 = vpop.permute.xlu0 %658
    %v660 = vsel %vm134, %v659, 0
    %662 = vmatprep.subr.mxu0 0.0
    %663 = vmatpush1.msra.mxu0 %v27
    %664 = vmatprep.subr.mxu0 0.0
    %665 = vmatpush1.msra.mxu0 %v28
    %666 = vmatprep.subr.mxu0 0.0
    %667 = vmatpush1.msra.mxu0 %v29
    %668 = vmatprep.subr.mxu0 0.0
    %669 = vmatpush1.msra.mxu0 %v30
    %670 = vmatprep.subr.mxu0 0.0
    %671 = vmatpush1.msra.mxu0 0.0
    %672 = vmatprep.subr.mxu0 0.0
    %673 = vmatpush1.msra.mxu0 0.0
    %674 = vmatprep.subr.mxu0 0.0
    %675 = vmatpush1.msra.mxu0 0.0
    %676 = vmatprep.subr.mxu0 0.0
    %677 = vmatpush1.msra.mxu0 0.0
    %678 = vmatprep.subr.mxu0 0.0
    %679 = vmatpush1.msra.mxu0 0.0
    %680 = vmatprep.subr.mxu0 0.0
    %681 = vmatpush1.msra.mxu0 0.0
    %682 = vmatprep.subr.mxu0 0.0
    %683 = vmatpush1.msra.mxu0 0.0
    %684 = vmatprep.subr.mxu0 0.0
    %685 = vmatpush1.msra.mxu0 0.0
    %686 = vmatprep.subr.mxu0 0.0
    %687 = vmatpush1.msra.mxu0 0.0
    %688 = vmatprep.subr.mxu0 0.0
    %689 = vmatpush1.msra.mxu0 0.0
    %690 = vmatprep.subr.mxu0 0.0
    %691 = vmatpush1.msra.mxu0 0.0
    %692 = vmatprep.subr.mxu0 0.0
    %693 = vmatpush1.msra.mxu0 0.0
    %694 = vmatprep.subr.mxu0 0.0
    %695 = vmatpush1.msra.mxu0 0.0
    %696 = vmatprep.subr.mxu0 0.0
    %697 = vmatpush1.msra.mxu0 0.0
    %698 = vmatprep.subr.mxu0 0.0
    %699 = vmatpush1.msra.mxu0 0.0
    %700 = vmatprep.subr.mxu0 0.0
    %701 = vmatpush1.msra.mxu0 0.0
    %702 = vmatprep.subr.mxu0 0.0
    %703 = vmatpush1.msra.mxu0 0.0
    %704 = vmatprep.subr.mxu0 0.0
    %705 = vmatpush1.msra.mxu0 0.0
    %706 = vmatprep.subr.mxu0 0.0
    %707 = vmatpush1.msra.mxu0 0.0
    %708 = vmatprep.subr.mxu0 0.0
    %709 = vmatpush1.msra.mxu0 0.0
    %710 = vmatprep.subr.mxu0 0.0
    %711 = vmatpush1.msra.mxu0 0.0
    %712 = vmatprep.subr.mxu0 0.0
    %713 = vmatpush1.msra.mxu0 0.0
    %714 = vmatprep.subr.mxu0 0.0
    %715 = vmatpush1.msra.mxu0 0.0
    %716 = vmatprep.subr.mxu0 0.0
    %717 = vmatpush1.msra.mxu0 0.0
    %718 = vmatprep.subr.mxu0 0.0
    %719 = vmatpush1.msra.mxu0 0.0
    %720 = vmatprep.subr.mxu0 0.0
    %721 = vmatpush1.msra.mxu0 0.0
    %722 = vmatprep.subr.mxu0 0.0
    %723 = vmatpush1.msra.mxu0 0.0
    %724 = vmatprep.subr.mxu0 0.0
    %725 = vmatpush1.msra.mxu0 0.0
    %726 = vmatprep.mubr.f32.mxu0 0.0
    %727 = vmatmul.mubr.f32.gmra.mrb[0].mxu0 %v660
    %v728 = vpop.f32.mrb[0].mxu0
    %v729 = vadd.f32 0.0, %v728
    %v730 = vpop.f32.mrb[0].mxu0
    %731 = vdwg.mxu0
    %v733 = vrot.slane %v729, 6
    %v735 = vadd.f32 %v131, %v733
    %v736 = vxor.u32 %v735, 2147483648
    %v737 = vmul.f32 %v736, 1.442695
    %v738 = vpow.pop %v737
    %v739 = vadd.f32 %v738, 1.0
    %v740 = vrcp.pop %v739
    %v741 = vmul.f32 1.0, %v740
    %v742 = vtanh.pop %v735
    %v744 = vrot.slane %v650, 6
    %v746 = vmul.f32 %v741, %v744
    %748 = vrot.lane.b32.xlu0 %v742, 64
    %v749 = vpop.permute.xlu0 %748
    %v751 = vmul.f32 %v741, %v749
    %753 = vrot.lane.b32.xlu0 %v751, 32
    %v754 = vpop.permute.xlu0 %753
    %v756 = vadd.f32 %v746, %v754
    %v757 = vtanh.pop %v756
    %759 = vrot.lane.b32.xlu0 %v757, 64
    %v760 = vpop.permute.xlu0 %759
    %v762 = vmul.f32 %v741, %v760
    %v764 = vrot.slane %v762, 2
    %765 = vrot.lane.b32.xlu0 %v764, 32
    %v766 = vpop.permute.xlu0 %765
    %v767 = vsel %vm134, %v766, 0
    %769 = vmatprep.subr.mxu0 0.0
    %770 = vmatpush1.msra.mxu0 %v27
    %771 = vmatprep.subr.mxu0 0.0
    %772 = vmatpush1.msra.mxu0 %v28
    %773 = vmatprep.subr.mxu0 0.0
    %774 = vmatpush1.msra.mxu0 %v29
    %775 = vmatprep.subr.mxu0 0.0
    %776 = vmatpush1.msra.mxu0 %v30
    %777 = vmatprep.subr.mxu0 0.0
    %778 = vmatpush1.msra.mxu0 0.0
    %779 = vmatprep.subr.mxu0 0.0
    %780 = vmatpush1.msra.mxu0 0.0
    %781 = vmatprep.subr.mxu0 0.0
    %782 = vmatpush1.msra.mxu0 0.0
    %783 = vmatprep.subr.mxu0 0.0
    %784 = vmatpush1.msra.mxu0 0.0
    %785 = vmatprep.subr.mxu0 0.0
    %786 = vmatpush1.msra.mxu0 0.0
    %787 = vmatprep.subr.mxu0 0.0
    %788 = vmatpush1.msra.mxu0 0.0
    %789 = vmatprep.subr.mxu0 0.0
    %790 = vmatpush1.msra.mxu0 0.0
    %791 = vmatprep.subr.mxu0 0.0
    %792 = vmatpush1.msra.mxu0 0.0
    %793 = vmatprep.subr.mxu0 0.0
    %794 = vmatpush1.msra.mxu0 0.0
    %795 = vmatprep.subr.mxu0 0.0
    %796 = vmatpush1.msra.mxu0 0.0
    %797 = vmatprep.subr.mxu0 0.0
    %798 = vmatpush1.msra.mxu0 0.0
    %799 = vmatprep.subr.mxu0 0.0
    %800 = vmatpush1.msra.mxu0 0.0
    %801 = vmatprep.subr.mxu0 0.0
    %802 = vmatpush1.msra.mxu0 0.0
    %803 = vmatprep.subr.mxu0 0.0
    %804 = vmatpush1.msra.mxu0 0.0
    %805 = vmatprep.subr.mxu0 0.0
    %806 = vmatpush1.msra.mxu0 0.0
    %807 = vmatprep.subr.mxu0 0.0
    %808 = vmatpush1.msra.mxu0 0.0
    %809 = vmatprep.subr.mxu0 0.0
    %810 = vmatpush1.msra.mxu0 0.0
    %811 = vmatprep.subr.mxu0 0.0
    %812 = vmatpush1.msra.mxu0 0.0
    %813 = vmatprep.subr.mxu0 0.0
    %814 = vmatpush1.msra.mxu0 0.0
    %815 = vmatprep.subr.mxu0 0.0
    %816 = vmatpush1.msra.mxu0 0.0
    %817 = vmatprep.subr.mxu0 0.0
    %818 = vmatpush1.msra.mxu0 0.0
    %819 = vmatprep.subr.mxu0 0.0
    %820 = vmatpush1.msra.mxu0 0.0
    %821 = vmatprep.subr.mxu0 0.0
    %822 = vmatpush1.msra.mxu0 0.0
    %823 = vmatprep.subr.mxu0 0.0
    %824 = vmatpush1.msra.mxu0 0.0
    %825 = vmatprep.subr.mxu0 0.0
    %826 = vmatpush1.msra.mxu0 0.0
    %827 = vmatprep.subr.mxu0 0.0
    %828 = vmatpush1.msra.mxu0 0.0
    %829 = vmatprep.subr.mxu0 0.0
    %830 = vmatpush1.msra.mxu0 0.0
    %831 = vmatprep.subr.mxu0 0.0
    %832 = vmatpush1.msra.mxu0 0.0
    %833 = vmatprep.mubr.f32.mxu0 0.0
    %834 = vmatmul.mubr.f32.gmra.mrb[0].mxu0 %v767
    %v835 = vpop.f32.mrb[0].mxu0
    %v836 = vadd.f32 0.0, %v835
    %v837 = vpop.f32.mrb[0].mxu0
    %838 = vdwg.mxu0
    %v840 = vrot.slane %v836, 4
    %v842 = vadd.f32 %v131, %v840
    %v843 = vxor.u32 %v842, 2147483648
    %v844 = vmul.f32 %v843, 1.442695
    %v845 = vpow.pop %v844
    %v846 = vadd.f32 %v845, 1.0
    %v847 = vrcp.pop %v846
    %v848 = vmul.f32 1.0, %v847
    %v849 = vtanh.pop %v842
    %v851 = vrot.slane %v756, 6
    %v853 = vmul.f32 %v848, %v851
    %855 = vrot.lane.b32.xlu0 %v849, 64
    %v856 = vpop.permute.xlu0 %855
    %v858 = vmul.f32 %v848, %v856
    %860 = vrot.lane.b32.xlu0 %v858, 32
    %v861 = vpop.permute.xlu0 %860
    %v863 = vadd.f32 %v853, %v861
    %v864 = vtanh.pop %v863
    %866 = vrot.lane.b32.xlu0 %v864, 64
    %v867 = vpop.permute.xlu0 %866
    %v869 = vmul.f32 %v848, %v867
    %v871 = vrot.slane %v869, 4
    %872 = vrot.lane.b32.xlu0 %v871, 32
    %v873 = vpop.permute.xlu0 %872
    %v874 = vsel %vm134, %v873, 0
    %876 = vmatprep.subr.mxu0 0.0
    %877 = vmatpush1.msra.mxu0 %v27
    %878 = vmatprep.subr.mxu0 0.0
    %879 = vmatpush1.msra.mxu0 %v28
    %880 = vmatprep.subr.mxu0 0.0
    %881 = vmatpush1.msra.mxu0 %v29
    %882 = vmatprep.subr.mxu0 0.0
    %883 = vmatpush1.msra.mxu0 %v30
    %884 = vmatprep.subr.mxu0 0.0
    %885 = vmatpush1.msra.mxu0 0.0
    %886 = vmatprep.subr.mxu0 0.0
    %887 = vmatpush1.msra.mxu0 0.0
    %888 = vmatprep.subr.mxu0 0.0
    %889 = vmatpush1.msra.mxu0 0.0
    %890 = vmatprep.subr.mxu0 0.0
    %891 = vmatpush1.msra.mxu0 0.0
    %892 = vmatprep.subr.mxu0 0.0
    %893 = vmatpush1.msra.mxu0 0.0
    %894 = vmatprep.subr.mxu0 0.0
    %895 = vmatpush1.msra.mxu0 0.0
    %896 = vmatprep.subr.mxu0 0.0
    %897 = vmatpush1.msra.mxu0 0.0
    %898 = vmatprep.subr.mxu0 0.0
    %899 = vmatpush1.msra.mxu0 0.0
    %900 = vmatprep.subr.mxu0 0.0
    %901 = vmatpush1.msra.mxu0 0.0
    %902 = vmatprep.subr.mxu0 0.0
    %903 = vmatpush1.msra.mxu0 0.0
    %904 = vmatprep.subr.mxu0 0.0
    %905 = vmatpush1.msra.mxu0 0.0
    %906 = vmatprep.subr.mxu0 0.0
    %907 = vmatpush1.msra.mxu0 0.0
    %908 = vmatprep.subr.mxu0 0.0
    %909 = vmatpush1.msra.mxu0 0.0
    %910 = vmatprep.subr.mxu0 0.0
    %911 = vmatpush1.msra.mxu0 0.0
    %912 = vmatprep.subr.mxu0 0.0
    %913 = vmatpush1.msra.mxu0 0.0
    %914 = vmatprep.subr.mxu0 0.0
    %915 = vmatpush1.msra.mxu0 0.0
    %916 = vmatprep.subr.mxu0 0.0
    %917 = vmatpush1.msra.mxu0 0.0
    %918 = vmatprep.subr.mxu0 0.0
    %919 = vmatpush1.msra.mxu0 0.0
    %920 = vmatprep.subr.mxu0 0.0
    %921 = vmatpush1.msra.mxu0 0.0
    %922 = vmatprep.subr.mxu0 0.0
    %923 = vmatpush1.msra.mxu0 0.0
    %924 = vmatprep.subr.mxu0 0.0
    %925 = vmatpush1.msra.mxu0 0.0
    %926 = vmatprep.subr.mxu0 0.0
    %927 = vmatpush1.msra.mxu0 0.0
    %928 = vmatprep.subr.mxu0 0.0
    %929 = vmatpush1.msra.mxu0 0.0
    %930 = vmatprep.subr.mxu0 0.0
    %931 = vmatpush1.msra.mxu0 0.0
    %932 = vmatprep.subr.mxu0 0.0
    %933 = vmatpush1.msra.mxu0 0.0
    %934 = vmatprep.subr.mxu0 0.0
    %935 = vmatpush1.msra.mxu0 0.0
    %936 = vmatprep.subr.mxu0 0.0
    %937 = vmatpush1.msra.mxu0 0.0
    %938 = vmatprep.subr.mxu0 0.0
    %939 = vmatpush1.msra.mxu0 0.0
    %940 = vmatprep.mubr.f32.mxu0 0.0
    %941 = vmatmul.mubr.f32.gmra.mrb[0].mxu0 %v874
    %v942 = vpop.f32.mrb[0].mxu0
    %v943 = vadd.f32 0.0, %v942
    %v944 = vpop.f32.mrb[0].mxu0
    %945 = vdwg.mxu0
    %v947 = vrot.slane %v943, 2
    %v949 = vadd.f32 %v131, %v947
    %v950 = vxor.u32 %v949, 2147483648
    %v951 = vmul.f32 %v950, 1.442695
    %v952 = vpow.pop %v951
    %v953 = vadd.f32 %v952, 1.0
    %v954 = vrcp.pop %v953
    %v955 = vmul.f32 1.0, %v954
    %v956 = vtanh.pop %v949
    %v958 = vrot.slane %v863, 6
    %v960 = vmul.f32 %v955, %v958
    %962 = vrot.lane.b32.xlu0 %v956, 64
    %v963 = vpop.permute.xlu0 %962
    %v965 = vmul.f32 %v955, %v963
    %967 = vrot.lane.b32.xlu0 %v965, 32
    %v968 = vpop.permute.xlu0 %967
    %v970 = vadd.f32 %v960, %v968
    %v971 = vtanh.pop %v970
    %973 = vrot.lane.b32.xlu0 %v971, 64
    %v974 = vpop.permute.xlu0 %973
    %v976 = vmul.f32 %v955, %v974
    %vm977 = vcmask 1041408
    %v978 = vsel %vm977, %v232, %v338
    %v979 = vsel %vm55, %v978, %v445
    %vm980 = vcmask 1045504
    %v981 = vsel %vm980, %v979, %v552
    %v982 = vsel %vm977, %v656, %v762
    %v983 = vsel %vm55, %v982, %v869
    %v984 = vsel %vm980, %v983, %v976
    %v985 = vlaneseq
    %v986 = vshrl.u32 %v985, 7
    %v987 = vsub.s32 0, %v986
    %v988 = vrot.slane %v40, %v987
    %991 = vrot.lane.b32.xlu0 %v981, 32
    %v992 = vpop.permute.xlu0 %991
    %993 = vrot.lane.b32.xlu0 %v984, 32
    %v994 = vpop.permute.xlu0 %993
    %v995 = vsel %vm134, %v992, 0
    %v997 = vsel %vm134, %v994, 0
    %999 = vmatprep.subr.mxu0 0.0
    %1000 = vmatpush1.msra.mxu0 %v31
    %1001 = vmatprep.subr.mxu0 0.0
    %1002 = vmatpush1.msra.mxu0 %v32
    %1003 = vmatprep.subr.mxu0 0.0
    %1004 = vmatpush1.msra.mxu0 %v33
    %1005 = vmatprep.subr.mxu0 0.0
    %1006 = vmatpush1.msra.mxu0 %v34
    %1007 = vmatprep.subr.mxu0 0.0
    %1008 = vmatpush1.msra.mxu0 0.0
    %1009 = vmatprep.subr.mxu0 0.0
    %1010 = vmatpush1.msra.mxu0 0.0
    %1011 = vmatprep.subr.mxu0 0.0
    %1012 = vmatpush1.msra.mxu0 0.0
    %1013 = vmatprep.subr.mxu0 0.0
    %1014 = vmatpush1.msra.mxu0 0.0
    %1015 = vmatprep.subr.mxu0 0.0
    %1016 = vmatpush1.msra.mxu0 0.0
    %1017 = vmatprep.subr.mxu0 0.0
    %1018 = vmatpush1.msra.mxu0 0.0
    %1019 = vmatprep.subr.mxu0 0.0
    %1020 = vmatpush1.msra.mxu0 0.0
    %1021 = vmatprep.subr.mxu0 0.0
    %1022 = vmatpush1.msra.mxu0 0.0
    %1023 = vmatprep.subr.mxu0 0.0
    %1024 = vmatpush1.msra.mxu0 0.0
    %1025 = vmatprep.subr.mxu0 0.0
    %1026 = vmatpush1.msra.mxu0 0.0
    %1027 = vmatprep.subr.mxu0 0.0
    %1028 = vmatpush1.msra.mxu0 0.0
    %1029 = vmatprep.subr.mxu0 0.0
    %1030 = vmatpush1.msra.mxu0 0.0
    %1031 = vmatprep.subr.mxu0 0.0
    %1032 = vmatpush1.msra.mxu0 0.0
    %1033 = vmatprep.subr.mxu0 0.0
    %1034 = vmatpush1.msra.mxu0 0.0
    %1035 = vmatprep.subr.mxu0 0.0
    %1036 = vmatpush1.msra.mxu0 0.0
    %1037 = vmatprep.subr.mxu0 0.0
    %1038 = vmatpush1.msra.mxu0 0.0
    %1039 = vmatprep.subr.mxu0 0.0
    %1040 = vmatpush1.msra.mxu0 0.0
    %1041 = vmatprep.subr.mxu0 0.0
    %1042 = vmatpush1.msra.mxu0 0.0
    %1043 = vmatprep.subr.mxu0 0.0
    %1044 = vmatpush1.msra.mxu0 0.0
    %1045 = vmatprep.subr.mxu0 0.0
    %1046 = vmatpush1.msra.mxu0 0.0
    %1047 = vmatprep.subr.mxu0 0.0
    %1048 = vmatpush1.msra.mxu0 0.0
    %1049 = vmatprep.subr.mxu0 0.0
    %1050 = vmatpush1.msra.mxu0 0.0
    %1051 = vmatprep.subr.mxu0 0.0
    %1052 = vmatpush1.msra.mxu0 0.0
    %1053 = vmatprep.subr.mxu0 0.0
    %1054 = vmatpush1.msra.mxu0 0.0
    %1055 = vmatprep.subr.mxu0 0.0
    %1056 = vmatpush1.msra.mxu0 0.0
    %1057 = vmatprep.subr.mxu0 0.0
    %1058 = vmatpush1.msra.mxu0 0.0
    %1059 = vmatprep.subr.mxu0 0.0
    %1060 = vmatpush1.msra.mxu0 0.0
    %1061 = vmatprep.subr.mxu0 0.0
    %1062 = vmatpush1.msra.mxu0 0.0
    %1063 = vmatprep.mubr.f32.mxu0 0.0
    %1064 = vmatmul.mubr.f32.gmra.mrb[0].mxu0 %v995
    %v1065 = vpop.f32.mrb[0].mxu0
    %v1066 = vadd.f32 %v988, %v1065
    %v1067 = vpop.f32.mrb[0].mxu0
    %1068 = vmatprep.mubr.f32.mxu0 0.0
    %1069 = vmatmul.mubr.f32.gmra.mrb[0].mxu0 %v997
    %v1070 = vpop.f32.mrb[0].mxu0
    %v1071 = vadd.f32 %v988, %v1070
    %v1072 = vpop.f32.mrb[0].mxu0
    %1073 = vdwg.mxu0
    %v1074 = vlaneseq
    %v1075 = vshrl.u32 %v1074, 7
    %v1076 = vadd.s32 %v1075, 8
    %v1077 = vadd.s32 %v1075, 16
    %v1078 = vadd.s32 %v1075, 24
    %v1079 = vlaneseq
    %v1080 = vand.u32 %v1079, 127
    %v1081 = vmul.u32 %v1080, 16
    %vm1082 = vcmp.ge.s32.totalorder %v1075, %v1081
    %vm1083 = vcmp.ge.s32.totalorder %v1076, %v1081
    %vm1084 = vcmp.ge.s32.totalorder %v1077, %v1081
    %vm1085 = vcmp.ge.s32.totalorder %v1078, %v1081
    %v1086 = vadd.s32 %v1080, 1
    %v1087 = vmul.u32 %v1086, 16
    %vm1088 = vcmp.lt.s32.totalorder %v1075, %v1087
    %vm1089 = vcmp.lt.s32.totalorder %v1076, %v1087
    %vm1090 = vcmp.lt.s32.totalorder %v1077, %v1087
    %vm1091 = vcmp.lt.s32.totalorder %v1078, %v1087
    %vm1092 = vmand %vm1082, %vm1088
    %vm1093 = vmand %vm1083, %vm1089
    %vm1094 = vmand %vm1084, %vm1090
    %vm1095 = vmand %vm1085, %vm1091
    %v1096 = vsel %vm1092, 1, 0
    %v1097 = vsel %vm1093, 1, 0
    %v1098 = vsel %vm1094, 1, 0
    %v1099 = vsel %vm1095, 1, 0
    %v1100 = vcvt.s32.f32 %v1096
    %v1101 = vcvt.s32.f32 %v1097
    %v1102 = vcvt.s32.f32 %v1098
    %v1103 = vcvt.s32.f32 %v1099
    %v1104 = vmul.u32 %v1075, 16
    %vm1105 = vcmp.ge.s32.totalorder %v1080, %v1104
    %v1106 = vadd.s32 %v1075, 1
    %v1107 = vmul.u32 %v1106, 16
    %vm1108 = vcmp.lt.s32.totalorder %v1080, %v1107
    %vm1109 = vmand %vm1105, %vm1108
    %v1110 = vsel %vm1109, 1, 0
    %v1111 = vcvt.s32.f32 %v1110
    %v1113 = vrot.slane %v1071, 6
    %v1115 = vrot.slane %v1071, 4
    %v1117 = vrot.slane %v1071, 2
    %v1119 = vsel %vm977, %v1113, %v1115
    %v1120 = vsel %vm55, %v1119, %v1117
    %v1121 = vsel %vm980, %v1120, %v1071
    %1123 = vrot.lane.b32.xlu0 %v1121, 32
    %v1124 = vpop.permute.xlu0 %1123
    %v1126 = vmul.f32 %v1066, %v1124
    %v1127 = vmul.f32 %v1071, %v1124
    %1130 = vrot.lane.b32.xlu0 %v1126, 96
    %v1131 = vpop.permute.xlu0 %1130
    %1132 = vrot.lane.b32.xlu0 %v1127, 96
    %v1133 = vpop.permute.xlu0 %1132
    %v1134 = vsel %vm134, %v1131, 0
    %v1136 = vsel %vm134, %v1133, 0
    %1138 = vmatprep.subr.mxu0 0.0
    %1139 = vmatpush1.msra.mxu0 %v1100
    %1140 = vmatprep.subr.mxu0 0.0
    %1141 = vmatpush1.msra.mxu0 %v1101
    %1142 = vmatprep.subr.mxu0 0.0
    %1143 = vmatpush1.msra.mxu0 %v1102
    %1144 = vmatprep.subr.mxu0 0.0
    %1145 = vmatpush1.msra.mxu0 %v1103
    %1146 = vmatprep.subr.mxu0 0.0
    %1147 = vmatpush1.msra.mxu0 0.0
    %1148 = vmatprep.subr.mxu0 0.0
    %1149 = vmatpush1.msra.mxu0 0.0
    %1150 = vmatprep.subr.mxu0 0.0
    %1151 = vmatpush1.msra.mxu0 0.0
    %1152 = vmatprep.subr.mxu0 0.0
    %1153 = vmatpush1.msra.mxu0 0.0
    %1154 = vmatprep.subr.mxu0 0.0
    %1155 = vmatpush1.msra.mxu0 0.0
    %1156 = vmatprep.subr.mxu0 0.0
    %1157 = vmatpush1.msra.mxu0 0.0
    %1158 = vmatprep.subr.mxu0 0.0
    %1159 = vmatpush1.msra.mxu0 0.0
    %1160 = vmatprep.subr.mxu0 0.0
    %1161 = vmatpush1.msra.mxu0 0.0
    %1162 = vmatprep.subr.mxu0 0.0
    %1163 = vmatpush1.msra.mxu0 0.0
    %1164 = vmatprep.subr.mxu0 0.0
    %1165 = vmatpush1.msra.mxu0 0.0
    %1166 = vmatprep.subr.mxu0 0.0
    %1167 = vmatpush1.msra.mxu0 0.0
    %1168 = vmatprep.subr.mxu0 0.0
    %1169 = vmatpush1.msra.mxu0 0.0
    %1170 = vmatprep.subr.mxu0 0.0
    %1171 = vmatpush1.msra.mxu0 0.0
    %1172 = vmatprep.subr.mxu0 0.0
    %1173 = vmatpush1.msra.mxu0 0.0
    %1174 = vmatprep.subr.mxu0 0.0
    %1175 = vmatpush1.msra.mxu0 0.0
    %1176 = vmatprep.subr.mxu0 0.0
    %1177 = vmatpush1.msra.mxu0 0.0
    %1178 = vmatprep.subr.mxu0 0.0
    %1179 = vmatpush1.msra.mxu0 0.0
    %1180 = vmatprep.subr.mxu0 0.0
    %1181 = vmatpush1.msra.mxu0 0.0
    %1182 = vmatprep.subr.mxu0 0.0
    %1183 = vmatpush1.msra.mxu0 0.0
    %1184 = vmatprep.subr.mxu0 0.0
    %1185 = vmatpush1.msra.mxu0 0.0
    %1186 = vmatprep.subr.mxu0 0.0
    %1187 = vmatpush1.msra.mxu0 0.0
    %1188 = vmatprep.subr.mxu0 0.0
    %1189 = vmatpush1.msra.mxu0 0.0
    %1190 = vmatprep.subr.mxu0 0.0
    %1191 = vmatpush1.msra.mxu0 0.0
    %1192 = vmatprep.subr.mxu0 0.0
    %1193 = vmatpush1.msra.mxu0 0.0
    %1194 = vmatprep.subr.mxu0 0.0
    %1195 = vmatpush1.msra.mxu0 0.0
    %1196 = vmatprep.subr.mxu0 0.0
    %1197 = vmatpush1.msra.mxu0 0.0
    %1198 = vmatprep.subr.mxu0 0.0
    %1199 = vmatpush1.msra.mxu0 0.0
    %1200 = vmatprep.subr.mxu0 0.0
    %1201 = vmatpush1.msra.mxu0 0.0
    %1202 = vmatprep.mubr.f32.mxu0 0.0
    %1203 = vmatmul.mubr.f32.gmra.mrb[0].mxu0 %v1134
    %v1204 = vpop.f32.mrb[0].mxu0
    %v1205 = vadd.f32 0.0, %v1204
    %v1206 = vpop.f32.mrb[0].mxu0
    %1207 = vmatprep.mubr.f32.mxu0 0.0
    %1208 = vmatmul.mubr.f32.gmra.mrb[0].mxu0 %v1136
    %v1209 = vpop.f32.mrb[0].mxu0
    %v1210 = vadd.f32 0.0, %v1209
    %v1211 = vpop.f32.mrb[0].mxu0
    %1212 = vdwg.mxu0
    %v1214 = vrot.slane %v1205, 2
    %v1216 = vmax.f32 %v1205, %v1214
    %v1217 = vrot.slane %v1205, 4
    %v1219 = vmax.f32 %v1216, %v1217
    %v1220 = vrot.slane %v1205, 6
    %v1222 = vmax.f32 %v1219, %v1220
    %v1223 = vmax.f32 %v1222, %v1210
    %v1225 = vrot.slane %v1210, 2
    %v1227 = vmax.f32 %v1223, %v1225
    %v1228 = vrot.slane %v1210, 4
    %v1230 = vmax.f32 %v1227, %v1228
    %v1231 = vrot.slane %v1210, 6
    %v1233 = vmax.f32 %v1230, %v1231
    %v1235 = vrot.slane %v1233, 6
    %v1237 = vrot.slane %v1233, 4
    %v1239 = vrot.slane %v1233, 2
    %v1241 = vsel %vm977, %v1233, %v1235
    %v1242 = vsel %vm55, %v1241, %v1237
    %v1243 = vsel %vm980, %v1242, %v1239
    %v1244 = vsub.f32 %v1205, %v1243
    %v1245 = vsub.f32 %v1210, %v1243
    %v1246 = vmul.f32 %v1244, 1.442695
    %v1247 = vpow.pop %v1246
    %v1248 = vmul.f32 %v1245, 1.442695
    %v1249 = vpow.pop %v1248
    %v1251 = vrot.slane %v1247, 2
    %v1253 = vadd.f32 %v1247, %v1251
    %v1254 = vrot.slane %v1247, 4
    %v1256 = vadd.f32 %v1253, %v1254
    %v1257 = vrot.slane %v1247, 6
    %v1259 = vadd.f32 %v1256, %v1257
    %v1260 = vadd.f32 %v1259, %v1249
    %v1262 = vrot.slane %v1249, 2
    %v1264 = vadd.f32 %v1260, %v1262
    %v1265 = vrot.slane %v1249, 4
    %v1267 = vadd.f32 %v1264, %v1265
    %v1268 = vrot.slane %v1249, 6
    %v1270 = vadd.f32 %v1267, %v1268
    %vm1271 = vcmask 15360
    %v1272 = vsel %vm1271, %v1247, 0
    %v1274 = vsel %vm1271, %v1249, 0
    %v1277 = vsel %vm977, %v1111, 0
    %1279 = vmatprep.subr.mxu0 0.0
    %1280 = vmatpush1.msra.mxu0 %v1277
    %1281 = vmatprep.subr.mxu0 0.0
    %1282 = vmatpush1.msra.mxu0 0.0
    %1283 = vmatprep.subr.mxu0 0.0
    %1284 = vmatpush1.msra.mxu0 0.0
    %1285 = vmatprep.subr.mxu0 0.0
    %1286 = vmatpush1.msra.mxu0 0.0
    %1287 = vmatprep.subr.mxu0 0.0
    %1288 = vmatpush1.msra.mxu0 0.0
    %1289 = vmatprep.subr.mxu0 0.0
    %1290 = vmatpush1.msra.mxu0 0.0
    %1291 = vmatprep.subr.mxu0 0.0
    %1292 = vmatpush1.msra.mxu0 0.0
    %1293 = vmatprep.subr.mxu0 0.0
    %1294 = vmatpush1.msra.mxu0 0.0
    %1295 = vmatprep.subr.mxu0 0.0
    %1296 = vmatpush1.msra.mxu0 0.0
    %1297 = vmatprep.subr.mxu0 0.0
    %1298 = vmatpush1.msra.mxu0 0.0
    %1299 = vmatprep.subr.mxu0 0.0
    %1300 = vmatpush1.msra.mxu0 0.0
    %1301 = vmatprep.subr.mxu0 0.0
    %1302 = vmatpush1.msra.mxu0 0.0
    %1303 = vmatprep.subr.mxu0 0.0
    %1304 = vmatpush1.msra.mxu0 0.0
    %1305 = vmatprep.subr.mxu0 0.0
    %1306 = vmatpush1.msra.mxu0 0.0
    %1307 = vmatprep.subr.mxu0 0.0
    %1308 = vmatpush1.msra.mxu0 0.0
    %1309 = vmatprep.subr.mxu0 0.0
    %1310 = vmatpush1.msra.mxu0 0.0
    %1311 = vmatprep.subr.mxu0 0.0
    %1312 = vmatpush1.msra.mxu0 0.0
    %1313 = vmatprep.subr.mxu0 0.0
    %1314 = vmatpush1.msra.mxu0 0.0
    %1315 = vmatprep.subr.mxu0 0.0
    %1316 = vmatpush1.msra.mxu0 0.0
    %1317 = vmatprep.subr.mxu0 0.0
    %1318 = vmatpush1.msra.mxu0 0.0
    %1319 = vmatprep.subr.mxu0 0.0
    %1320 = vmatpush1.msra.mxu0 0.0
    %1321 = vmatprep.subr.mxu0 0.0
    %1322 = vmatpush1.msra.mxu0 0.0
    %1323 = vmatprep.subr.mxu0 0.0
    %1324 = vmatpush1.msra.mxu0 0.0
    %1325 = vmatprep.subr.mxu0 0.0
    %1326 = vmatpush1.msra.mxu0 0.0
    %1327 = vmatprep.subr.mxu0 0.0
    %1328 = vmatpush1.msra.mxu0 0.0
    %1329 = vmatprep.subr.mxu0 0.0
    %1330 = vmatpush1.msra.mxu0 0.0
    %1331 = vmatprep.subr.mxu0 0.0
    %1332 = vmatpush1.msra.mxu0 0.0
    %1333 = vmatprep.subr.mxu0 0.0
    %1334 = vmatpush1.msra.mxu0 0.0
    %1335 = vmatprep.subr.mxu0 0.0
    %1336 = vmatpush1.msra.mxu0 0.0
    %1337 = vmatprep.subr.mxu0 0.0
    %1338 = vmatpush1.msra.mxu0 0.0
    %1339 = vmatprep.subr.mxu0 0.0
    %1340 = vmatpush1.msra.mxu0 0.0
    %1341 = vmatprep.subr.mxu0 0.0
    %1342 = vmatpush1.msra.mxu0 0.0
    %1343 = vmatprep.mubr.f32.mxu0 0.0
    %1344 = vmatmul.mubr.f32.gmra.mrb[0].mxu0 %v1272
    %v1345 = vpop.f32.mrb[0].mxu0
    %v1346 = vadd.f32 0.0, %v1345
    %v1347 = vpop.f32.mrb[0].mxu0
    %1348 = vmatprep.mubr.f32.mxu0 0.0
    %1349 = vmatmul.mubr.f32.gmra.mrb[0].mxu0 %v1274
    %v1350 = vpop.f32.mrb[0].mxu0
    %v1351 = vadd.f32 0.0, %v1350
    %v1352 = vpop.f32.mrb[0].mxu0
    %1353 = vdwg.mxu0
    %1355 = vrot.lane.b32.xlu0 %v1066, 64
    %v1356 = vpop.permute.xlu0 %1355
    %1357 = vrot.lane.b32.xlu0 %v1071, 64
    %v1358 = vpop.permute.xlu0 %1357
    %v1361 = vmul.f32 %v1346, %v1356
    %v1362 = vmul.f32 %v1351, %v1358
    %v1364 = vrot.slane %v1361, 2
    %v1366 = vadd.f32 %v1361, %v1364
    %v1367 = vrot.slane %v1361, 4
    %v1369 = vadd.f32 %v1366, %v1367
    %v1370 = vrot.slane %v1361, 6
    %v1372 = vadd.f32 %v1369, %v1370
    %v1373 = vadd.f32 %v1372, %v1362
    %v1375 = vrot.slane %v1362, 2
    %v1377 = vadd.f32 %v1373, %v1375
    %v1378 = vrot.slane %v1362, 4
    %v1380 = vadd.f32 %v1377, %v1378
    %v1381 = vrot.slane %v1362, 6
    %v1383 = vadd.f32 %v1380, %v1381
    %v1385 = vsel %vm1271, %v1270, 0
    %1387 = vmatprep.subr.mxu0 0.0
    %1388 = vmatpush1.msra.mxu0 %v1277
    %1389 = vmatprep.subr.mxu0 0.0
    %1390 = vmatpush1.msra.mxu0 0.0
    %1391 = vmatprep.subr.mxu0 0.0
    %1392 = vmatpush1.msra.mxu0 0.0
    %1393 = vmatprep.subr.mxu0 0.0
    %1394 = vmatpush1.msra.mxu0 0.0
    %1395 = vmatprep.subr.mxu0 0.0
    %1396 = vmatpush1.msra.mxu0 0.0
    %1397 = vmatprep.subr.mxu0 0.0
    %1398 = vmatpush1.msra.mxu0 0.0
    %1399 = vmatprep.subr.mxu0 0.0
    %1400 = vmatpush1.msra.mxu0 0.0
    %1401 = vmatprep.subr.mxu0 0.0
    %1402 = vmatpush1.msra.mxu0 0.0
    %1403 = vmatprep.subr.mxu0 0.0
    %1404 = vmatpush1.msra.mxu0 0.0
    %1405 = vmatprep.subr.mxu0 0.0
    %1406 = vmatpush1.msra.mxu0 0.0
    %1407 = vmatprep.subr.mxu0 0.0
    %1408 = vmatpush1.msra.mxu0 0.0
    %1409 = vmatprep.subr.mxu0 0.0
    %1410 = vmatpush1.msra.mxu0 0.0
    %1411 = vmatprep.subr.mxu0 0.0
    %1412 = vmatpush1.msra.mxu0 0.0
    %1413 = vmatprep.subr.mxu0 0.0
    %1414 = vmatpush1.msra.mxu0 0.0
    %1415 = vmatprep.subr.mxu0 0.0
    %1416 = vmatpush1.msra.mxu0 0.0
    %1417 = vmatprep.subr.mxu0 0.0
    %1418 = vmatpush1.msra.mxu0 0.0
    %1419 = vmatprep.subr.mxu0 0.0
    %1420 = vmatpush1.msra.mxu0 0.0
    %1421 = vmatprep.subr.mxu0 0.0
    %1422 = vmatpush1.msra.mxu0 0.0
    %1423 = vmatprep.subr.mxu0 0.0
    %1424 = vmatpush1.msra.mxu0 0.0
    %1425 = vmatprep.subr.mxu0 0.0
    %1426 = vmatpush1.msra.mxu0 0.0
    %1427 = vmatprep.subr.mxu0 0.0
    %1428 = vmatpush1.msra.mxu0 0.0
    %1429 = vmatprep.subr.mxu0 0.0
    %1430 = vmatpush1.msra.mxu0 0.0
    %1431 = vmatprep.subr.mxu0 0.0
    %1432 = vmatpush1.msra.mxu0 0.0
    %1433 = vmatprep.subr.mxu0 0.0
    %1434 = vmatpush1.msra.mxu0 0.0
    %1435 = vmatprep.subr.mxu0 0.0
    %1436 = vmatpush1.msra.mxu0 0.0
    %1437 = vmatprep.subr.mxu0 0.0
    %1438 = vmatpush1.msra.mxu0 0.0
    %1439 = vmatprep.subr.mxu0 0.0
    %1440 = vmatpush1.msra.mxu0 0.0
    %1441 = vmatprep.subr.mxu0 0.0
    %1442 = vmatpush1.msra.mxu0 0.0
    %1443 = vmatprep.subr.mxu0 0.0
    %1444 = vmatpush1.msra.mxu0 0.0
    %1445 = vmatprep.subr.mxu0 0.0
    %1446 = vmatpush1.msra.mxu0 0.0
    %1447 = vmatprep.subr.mxu0 0.0
    %1448 = vmatpush1.msra.mxu0 0.0
    %1449 = vmatprep.subr.mxu0 0.0
    %1450 = vmatpush1.msra.mxu0 0.0
    %1451 = vmatprep.mubr.f32.mxu0 0.0
    %1452 = vmatmul.mubr.f32.gmra.mrb[0].mxu0 %v1385
    %v1453 = vpop.f32.mrb[0].mxu0
    %v1454 = vadd.f32 0.0, %v1453
    %v1455 = vpop.f32.mrb[0].mxu0
    %1456 = vdwg.mxu0
    %v1457 = vrcp.pop %v1454
    %v1458 = vmul.f32 %v1383, %v1457
    %v1459 = vlaneseq
    %v1460 = vshrl.u32 %v1459, 7
    %v1461 = vsub.s32 0, %v1460
    %v1462 = vrot.slane %v41, %v1461
    %v1464 = vsel %vm134, %v1458, 0
    %1466 = vmatprep.subr.mxu0 0.0
    %1467 = vmatpush1.msra.mxu0 %v35
    %1468 = vmatprep.subr.mxu0 0.0
    %1469 = vmatpush1.msra.mxu0 %v36
    %1470 = vmatprep.subr.mxu0 0.0
    %1471 = vmatpush1.msra.mxu0 %v37
    %1472 = vmatprep.subr.mxu0 0.0
    %1473 = vmatpush1.msra.mxu0 %v38
    %1474 = vmatprep.subr.mxu0 0.0
    %1475 = vmatpush1.msra.mxu0 0.0
    %1476 = vmatprep.subr.mxu0 0.0
    %1477 = vmatpush1.msra.mxu0 0.0
    %1478 = vmatprep.subr.mxu0 0.0
    %1479 = vmatpush1.msra.mxu0 0.0
    %1480 = vmatprep.subr.mxu0 0.0
    %1481 = vmatpush1.msra.mxu0 0.0
    %1482 = vmatprep.subr.mxu0 0.0
    %1483 = vmatpush1.msra.mxu0 0.0
    %1484 = vmatprep.subr.mxu0 0.0
    %1485 = vmatpush1.msra.mxu0 0.0
    %1486 = vmatprep.subr.mxu0 0.0
    %1487 = vmatpush1.msra.mxu0 0.0
    %1488 = vmatprep.subr.mxu0 0.0
    %1489 = vmatpush1.msra.mxu0 0.0
    %1490 = vmatprep.subr.mxu0 0.0
    %1491 = vmatpush1.msra.mxu0 0.0
    %1492 = vmatprep.subr.mxu0 0.0
    %1493 = vmatpush1.msra.mxu0 0.0
    %1494 = vmatprep.subr.mxu0 0.0
    %1495 = vmatpush1.msra.mxu0 0.0
    %1496 = vmatprep.subr.mxu0 0.0
    %1497 = vmatpush1.msra.mxu0 0.0
    %1498 = vmatprep.subr.mxu0 0.0
    %1499 = vmatpush1.msra.mxu0 0.0
    %1500 = vmatprep.subr.mxu0 0.0
    %1501 = vmatpush1.msra.mxu0 0.0
    %1502 = vmatprep.subr.mxu0 0.0
    %1503 = vmatpush1.msra.mxu0 0.0
    %1504 = vmatprep.subr.mxu0 0.0
    %1505 = vmatpush1.msra.mxu0 0.0
    %1506 = vmatprep.subr.mxu0 0.0
    %1507 = vmatpush1.msra.mxu0 0.0
    %1508 = vmatprep.subr.mxu0 0.0
    %1509 = vmatpush1.msra.mxu0 0.0
    %1510 = vmatprep.subr.mxu0 0.0
    %1511 = vmatpush1.msra.mxu0 0.0
    %1512 = vmatprep.subr.mxu0 0.0
    %1513 = vmatpush1.msra.mxu0 0.0
    %1514 = vmatprep.subr.mxu0 0.0
    %1515 = vmatpush1.msra.mxu0 0.0
    %1516 = vmatprep.subr.mxu0 0.0
    %1517 = vmatpush1.msra.mxu0 0.0
    %1518 = vmatprep.subr.mxu0 0.0
    %1519 = vmatpush1.msra.mxu0 0.0
    %1520 = vmatprep.subr.mxu0 0.0
    %1521 = vmatpush1.msra.mxu0 0.0
    %1522 = vmatprep.subr.mxu0 0.0
    %1523 = vmatpush1.msra.mxu0 0.0
    %1524 = vmatprep.subr.mxu0 0.0
    %1525 = vmatpush1.msra.mxu0 0.0
    %1526 = vmatprep.subr.mxu0 0.0
    %1527 = vmatpush1.msra.mxu0 0.0
    %1528 = vmatprep.subr.mxu0 0.0
    %1529 = vmatpush1.msra.mxu0 0.0
    %1530 = vmatprep.mubr.f32.mxu0 0.0
    %1531 = vmatmul.mubr.f32.gmra.mrb[0].mxu0 %v1464
    %v1532 = vpop.f32.mrb[0].mxu0
    %v1533 = vadd.f32 %v1462, %v1532
    %v1534 = vpop.f32.mrb[0].mxu0
    %1535 = vdwg.mxu0
    %vm1536 = vcmask 25600
    %1537 = vst.msk [vmem:[#allocation5] sm:$0x3] %vm1536, %v1533
    // Predicated region
    $region14: #{lstm_attention_forward.1} parent=1 // pred_check
      _
    $region15: #{lstm_attention_forward.1} parent=1 // pred_check_branch
      %1539 = sbr.rel (0) target = $region17
    $region16: #{lstm_attention_forward.1} parent=1 // pred_region
      %s1541 = ssub.s32 32, 32
      %1542 = vsyncadd [#allocation4], %s1541
      %s1544 = sshll.u32 [#allocation5], 4
      %s1545 = int_to_ptr.vmem [resolvable:$true] %s1544
      %1547 = dma.vmem_to_hbm [thread:$0]  %s1545, 32, %s2, [#allocation4]
    $region17: #{lstm_attention_forward.1} parent=1 // pred_fallthru
      _
    // Predicated region
    $region18: #{lstm_attention_forward.1} parent=1 // pred_check
      _
    $region19: #{lstm_attention_forward.1} parent=1 // pred_check_branch
      %1549 = sbr.rel (0) target = $region21
    $region20: #{lstm_attention_forward.1} parent=1 // pred_region
      %1550 = dma.done [#allocation4], 32
    $region21: #{lstm_attention_forward.1} parent=1 // pred_fallthru
      _
    %1551 = vsyncpa [#allocation3], 1
    %1552 = vsyncpa [#allocation4], 1

</llo_original>
